<compile_context>
chip_gen: v5e
topology: v5e:2x2
jax: 0.10.0
libtpu: 0.0.40
codegen_flags: <defaults>
</compile_context>

<pallas_src>
import functools

import jax
import jax.numpy as jnp
from jax import lax
from jax.experimental import pallas as pl
from jax.experimental.pallas import tpu as pltpu

# ---- module hyper-parameters (small, consistent with the ViT usage) ----
SEQ_LEN = 16            # T
BATCH = 2               # B
EMBED_DIM = 32          # E
HIDDEN_DIM = 64         # hidden layer of the feed-forward net (2x embed)
NUM_HEADS = 4
HEAD_DIM = EMBED_DIM // NUM_HEADS   # 8
LN_EPS = 1e-5
# dropout = 0.0 -> identity (eval semantics); not materialized.


# ----------------------------- fused Pallas kernel -----------------------------

def _attention_block_kernel(
    x_ref,
    ln1_g_ref, ln1_b_ref,
    w_in_ref, b_in_ref,
    w_out_ref, b_out_ref,
    ln2_g_ref, ln2_b_ref,
    w1_ref, b1_ref,
    w2_ref, b2_ref,
    o_ref,
    *, batch, seq, heads, head_dim, eps,
):
    n = batch * seq
    e = heads * head_dim

    # seq-major rows: row r = t*batch + b  (a free reshape of the [T, B, E] input)
    x = x_ref[...]                                              # [N, E] f32

    # ---- LayerNorm 1 (biased variance, matches torch) ----
    mu = jnp.mean(x, axis=-1, keepdims=True)
    var = jnp.mean((x - mu) ** 2, axis=-1, keepdims=True)
    inp = (x - mu) * lax.rsqrt(var + eps) * ln1_g_ref[...] + ln1_b_ref[...]

    # ---- QKV projection: one lane-dense [N, 3E] slab ----
    qkv = jnp.dot(inp, w_in_ref[...], preferred_element_type=jnp.float32) + b_in_ref[...]
    scale = 1.0 / (head_dim ** 0.5)
    q = qkv[:, :e] * scale                                      # fold 1/sqrt(Dh) into q once
    k = qkv[:, e:2 * e]
    v = qkv[:, 2 * e:]

    # ---- cross-batch additive mask, computed once and shared by all heads ----
    # rows r, c belong to the same batch element iff r % batch == c % batch.
    rid = lax.broadcasted_iota(jnp.int32, (n, n), 0)
    cid = lax.broadcasted_iota(jnp.int32, (n, n), 1)
    mask_bias = jnp.where((rid % batch) == (cid % batch),
                          jnp.float32(0.0), jnp.float32(-1e30))

    # ---- multi-head self-attention: all heads, no batch reshapes / transposes ----
    head_outs = []
    for h in range(heads):                                      # unrolled at trace time
        sl = slice(h * head_dim, (h + 1) * head_dim)            # static lane slice
        qh = q[:, sl]                                           # [N, Dh]
        kh = k[:, sl]
        vh = v[:, sl]
        # contract the shared last axis (q @ k^T without an explicit transpose)
        s = lax.dot_general(qh, kh, (((1,), (1,)), ((), ())),
                            preferred_element_type=jnp.float32) + mask_bias
        m = jnp.max(s, axis=-1, keepdims=True)
        p = jnp.exp(s - m)
        l = jnp.sum(p, axis=-1, keepdims=True)
        p = p * pl.reciprocal(l, approx=True)                   # EUP, off the VALU path
        oh = jnp.dot(p, vh, preferred_element_type=jnp.float32)  # [N, Dh]
        head_outs.append(oh)
    attn = jnp.concatenate(head_outs, axis=-1)                  # [N, E] lane-dense slab

    # ---- output projection + residual (fused) ----
    z = x + jnp.dot(attn, w_out_ref[...], preferred_element_type=jnp.float32) + b_out_ref[...]

    # ---- LayerNorm 2 ----
    mu2 = jnp.mean(z, axis=-1, keepdims=True)
    var2 = jnp.mean((z - mu2) ** 2, axis=-1, keepdims=True)
    zn = (z - mu2) * lax.rsqrt(var2 + eps) * ln2_g_ref[...] + ln2_b_ref[...]

    # ---- MLP: FC1 + exact-erf GELU (torch.nn.GELU default) + FC2 + residual ----
    h1 = jnp.dot(zn, w1_ref[...], preferred_element_type=jnp.float32) + b1_ref[...]
    h1 = 0.5 * h1 * (1.0 + lax.erf(h1 * 0.7071067811865476))
    h2 = jnp.dot(h1, w2_ref[...], preferred_element_type=jnp.float32) + b2_ref[...]

    o_ref[...] = (z + h2).astype(o_ref.dtype)


# ----------------------------- wrapper -----------------------------

def attention_block(x, P):
    """x: [T, B, E] (seq-first, nn.MultiheadAttention batch_first=False default)."""
    T, B, E = x.shape
    n = T * B
    rows = x.reshape(n, E)                       # seq-major rows: FREE (no transpose kernel)

    kern = functools.partial(
        _attention_block_kernel,
        batch=B, seq=T, heads=NUM_HEADS, head_dim=E // NUM_HEADS, eps=LN_EPS)

    args = (
        rows,
        P["ln1_g"].reshape(1, E), P["ln1_b"].reshape(1, E),
        P["in_w"], P["in_b"].reshape(1, 3 * E),
        P["out_w"], P["out_b"].reshape(1, E),
        P["ln2_g"].reshape(1, E), P["ln2_b"].reshape(1, E),
        P["fc1_w"], P["fc1_b"].reshape(1, HIDDEN_DIM),
        P["fc2_w"], P["fc2_b"].reshape(1, E),
    )

    def full_spec(a):
        nd = a.ndim
        return pl.BlockSpec(a.shape, lambda i, _n=nd: (0,) * _n)

    out = pl.pallas_call(
        kern,
        out_shape=jax.ShapeDtypeStruct((n, E), jnp.float32),
        grid=(1,),                                   # whole block = one grid step
        in_specs=[full_spec(a) for a in args],
        out_specs=pl.BlockSpec((n, E), lambda i: (0, 0)),
        compiler_params=pltpu.CompilerParams(
            dimension_semantics=("arbitrary",)),
    )(*args)

    return out.reshape(T, B, E)                  # back to [T, B, E]: FREE (no transpose)


# ----------------------------- parameter init -----------------------------

def init_params(key):
    keys = iter(jax.random.split(key, 6))

    def nrm(shape, scale=0.02):
        return (scale * jax.random.normal(next(keys), shape)).astype(jnp.float32)

    E, H = EMBED_DIM, HIDDEN_DIM
    # NOTE: weights are column-major w.r.t. torch (w = torch_weight.T); in_w columns
    # are ordered q | k | v like torch's in_proj_weight rows.
    return dict(
        ln1_g=jnp.ones((E,), jnp.float32),
        ln1_b=jnp.zeros((E,), jnp.float32),
        in_w=nrm((E, 3 * E)),
        in_b=jnp.zeros((3 * E,), jnp.float32),
        out_w=nrm((E, E)),
        out_b=jnp.zeros((E,), jnp.float32),
        ln2_g=jnp.ones((E,), jnp.float32),
        ln2_b=jnp.zeros((E,), jnp.float32),
        fc1_w=nrm((E, H)),
        fc1_b=jnp.zeros((H,), jnp.float32),
        fc2_w=nrm((H, E)),
        fc2_b=jnp.zeros((E,), jnp.float32),
    )


if __name__ == "__main__":
    key = jax.random.PRNGKey(0)
    kx, kp = jax.random.split(key)
    x = jax.random.normal(kx, (SEQ_LEN, BATCH, EMBED_DIM), jnp.float32)
    params = init_params(kp)

    out = jax.jit(attention_block)(x, params)
    out = jax.block_until_ready(out)
    assert out.shape == (SEQ_LEN, BATCH, EMBED_DIM), out.shape
    assert bool(jnp.all(jnp.isfinite(out)))
    print("KERNEL_OK")
</pallas_src>

<mosaic_0001>
module attributes {stable_mosaic.version = 11 : i64} {
  func.func @_attention_block_kernel(%arg0: i32, %arg1: memref<32x32xf32, #tpu.memory_space<vmem>>, %arg2: memref<1x32xf32, #tpu.memory_space<vmem>>, %arg3: memref<1x32xf32, #tpu.memory_space<vmem>>, %arg4: memref<32x96xf32, #tpu.memory_space<vmem>>, %arg5: memref<1x96xf32, #tpu.memory_space<vmem>>, %arg6: memref<32x32xf32, #tpu.memory_space<vmem>>, %arg7: memref<1x32xf32, #tpu.memory_space<vmem>>, %arg8: memref<1x32xf32, #tpu.memory_space<vmem>>, %arg9: memref<1x32xf32, #tpu.memory_space<vmem>>, %arg10: memref<32x64xf32, #tpu.memory_space<vmem>>, %arg11: memref<1x64xf32, #tpu.memory_space<vmem>>, %arg12: memref<64x32xf32, #tpu.memory_space<vmem>>, %arg13: memref<1x32xf32, #tpu.memory_space<vmem>>, %arg14: memref<32x32xf32, #tpu.memory_space<vmem>>) attributes {dimension_semantics = [#tpu.dimension_semantics<arbitrary>], iteration_bounds = array<i64: 1>, scalar_prefetch = 0 : i64, scratch_operands = 0 : i64, tpu.core_type = #tpu.core_type<tc>, window_params = [{pipeline_mode = #tpu.pipeline_mode<synchronous>, transform_indices = @transform_0, window_bounds = array<i64: 32, 32>}, {pipeline_mode = #tpu.pipeline_mode<synchronous>, transform_indices = @transform_1, window_bounds = array<i64: 1, 32>}, {pipeline_mode = #tpu.pipeline_mode<synchronous>, transform_indices = @transform_2, window_bounds = array<i64: 1, 32>}, {pipeline_mode = #tpu.pipeline_mode<synchronous>, transform_indices = @transform_3, window_bounds = array<i64: 32, 96>}, {pipeline_mode = #tpu.pipeline_mode<synchronous>, transform_indices = @transform_4, window_bounds = array<i64: 1, 96>}, {pipeline_mode = #tpu.pipeline_mode<synchronous>, transform_indices = @transform_5, window_bounds = array<i64: 32, 32>}, {pipeline_mode = #tpu.pipeline_mode<synchronous>, transform_indices = @transform_6, window_bounds = array<i64: 1, 32>}, {pipeline_mode = #tpu.pipeline_mode<synchronous>, transform_indices = @transform_7, window_bounds = array<i64: 1, 32>}, {pipeline_mode = #tpu.pipeline_mode<synchronous>, transform_indices = @transform_8, window_bounds = array<i64: 1, 32>}, {pipeline_mode = #tpu.pipeline_mode<synchronous>, transform_indices = @transform_9, window_bounds = array<i64: 32, 64>}, {pipeline_mode = #tpu.pipeline_mode<synchronous>, transform_indices = @transform_10, window_bounds = array<i64: 1, 64>}, {pipeline_mode = #tpu.pipeline_mode<synchronous>, transform_indices = @transform_11, window_bounds = array<i64: 64, 32>}, {pipeline_mode = #tpu.pipeline_mode<synchronous>, transform_indices = @transform_12, window_bounds = array<i64: 1, 32>}, {pipeline_mode = #tpu.pipeline_mode<synchronous>, transform_indices = @transform_13, window_bounds = array<i64: 32, 32>}]} {
    %c0 = arith.constant 0 : index
    %c0_0 = arith.constant 0 : index
    %0 = vector.load %arg1[%c0, %c0_0] : memref<32x32xf32, #tpu.memory_space<vmem>>, vector<32x32xf32>
    %cst = arith.constant dense<0.000000e+00> : vector<32xf32>
    %1 = vector.multi_reduction <add>, %0, %cst [1] : vector<32x32xf32> to vector<32xf32>
    %2 = vector.shape_cast %1 : vector<32xf32> to vector<32x1xf32>
    %cst_1 = arith.constant 3.200000e+01 : f32
    %3 = vector.broadcast %cst_1 : f32 to vector<32x1xf32>
    %4 = arith.divf %2, %3 : vector<32x1xf32>
    %5 = vector.broadcast %4 : vector<32x1xf32> to vector<32x32xf32>
    %6 = arith.subf %0, %5 : vector<32x32xf32>
    %7 = arith.mulf %6, %6 : vector<32x32xf32>
    %cst_2 = arith.constant dense<0.000000e+00> : vector<32xf32>
    %8 = vector.multi_reduction <add>, %7, %cst_2 [1] : vector<32x32xf32> to vector<32xf32>
    %9 = vector.shape_cast %8 : vector<32xf32> to vector<32x1xf32>
    %cst_3 = arith.constant 3.200000e+01 : f32
    %10 = vector.broadcast %cst_3 : f32 to vector<32x1xf32>
    %11 = arith.divf %9, %10 : vector<32x1xf32>
    %12 = vector.broadcast %4 : vector<32x1xf32> to vector<32x32xf32>
    %13 = arith.subf %0, %12 : vector<32x32xf32>
    %cst_4 = arith.constant 9.99999974E-6 : f32
    %14 = vector.broadcast %cst_4 : f32 to vector<32x1xf32>
    %15 = arith.addf %11, %14 : vector<32x1xf32>
    %16 = math.rsqrt %15 : vector<32x1xf32>
    %17 = vector.broadcast %16 : vector<32x1xf32> to vector<32x32xf32>
    %18 = arith.mulf %13, %17 : vector<32x32xf32>
    %c0_5 = arith.constant 0 : index
    %c0_6 = arith.constant 0 : index
    %19 = vector.load %arg2[%c0_5, %c0_6] : memref<1x32xf32, #tpu.memory_space<vmem>>, vector<1x32xf32>
    %20 = vector.broadcast %19 : vector<1x32xf32> to vector<32x32xf32>
    %21 = arith.mulf %18, %20 : vector<32x32xf32>
    %c0_7 = arith.constant 0 : index
    %c0_8 = arith.constant 0 : index
    %22 = vector.load %arg3[%c0_7, %c0_8] : memref<1x32xf32, #tpu.memory_space<vmem>>, vector<1x32xf32>
    %23 = vector.broadcast %22 : vector<1x32xf32> to vector<32x32xf32>
    %24 = arith.addf %21, %23 : vector<32x32xf32>
    %c0_9 = arith.constant 0 : index
    %c0_10 = arith.constant 0 : index
    %25 = vector.load %arg4[%c0_9, %c0_10] : memref<32x96xf32, #tpu.memory_space<vmem>>, vector<32x96xf32>
    %cst_11 = arith.constant dense<0.000000e+00> : vector<32x96xf32>
    %26 = tpu.matmul %24, %25, %cst_11 {dimension_numbers = #tpu.dot_dimension_numbers<[1], [0], [0], [1], [0, 0, 1, 1], [], []>} : vector<32x32xf32>, vector<32x96xf32>, vector<32x96xf32> -> vector<32x96xf32>
    %c0_12 = arith.constant 0 : index
    %c0_13 = arith.constant 0 : index
    %27 = vector.load %arg5[%c0_12, %c0_13] : memref<1x96xf32, #tpu.memory_space<vmem>>, vector<1x96xf32>
    %28 = vector.broadcast %27 : vector<1x96xf32> to vector<32x96xf32>
    %29 = arith.addf %26, %28 : vector<32x96xf32>
    %30 = vector.extract_strided_slice %29 {offsets = [0, 0], sizes = [32, 32], strides = [1, 1]} : vector<32x96xf32> to vector<32x32xf32>
    %cst_14 = arith.constant 0.353553385 : f32
    %31 = vector.broadcast %cst_14 : f32 to vector<32x32xf32>
    %32 = arith.mulf %30, %31 : vector<32x32xf32>
    %33 = vector.extract_strided_slice %29 {offsets = [0, 32], sizes = [32, 32], strides = [1, 1]} : vector<32x96xf32> to vector<32x32xf32>
    %34 = vector.extract_strided_slice %29 {offsets = [0, 64], sizes = [32, 32], strides = [1, 1]} : vector<32x96xf32> to vector<32x32xf32>
    %35 = tpu.iota {dimensions = array<i32: 0>} : vector<32x32xi32>
    %36 = tpu.iota {dimensions = array<i32: 1>} : vector<32x32xi32>
    %c2_i32 = arith.constant 2 : i32
    %c0_i32 = arith.constant 0 : i32
    %37 = arith.cmpi eq, %c2_i32, %c0_i32 : i32
    %c1_i32 = arith.constant 1 : i32
    %38 = arith.select %37, %c1_i32, %c2_i32 : i32
    %39 = vector.broadcast %38 : i32 to vector<32x32xi32>
    %40 = arith.remsi %35, %39 : vector<32x32xi32>
    %c0_i32_15 = arith.constant 0 : i32
    %41 = vector.broadcast %c0_i32_15 : i32 to vector<32x32xi32>
    %42 = arith.cmpi ne, %40, %41 : vector<32x32xi32>
    %c0_i32_16 = arith.constant 0 : i32
    %43 = vector.broadcast %c0_i32_16 : i32 to vector<32x32xi32>
    %44 = arith.cmpi slt, %40, %43 : vector<32x32xi32>
    %c0_i32_17 = arith.constant 0 : i32
    %45 = arith.cmpi slt, %38, %c0_i32_17 : i32
    %46 = vector.broadcast %45 : i1 to vector<32x32xi1>
    %47 = vector.broadcast %46 : vector<32x32xi1> to vector<32x32xi1>
    %48 = arith.xori %44, %47 : vector<32x32xi1>
    %49 = arith.andi %48, %42 : vector<32x32xi1>
    %50 = vector.broadcast %38 : i32 to vector<32x32xi32>
    %51 = arith.addi %40, %50 : vector<32x32xi32>
    %52 = arith.select %49, %51, %40 : vector<32x32xi1>, vector<32x32xi32>
    %c2_i32_18 = arith.constant 2 : i32
    %c0_i32_19 = arith.constant 0 : i32
    %53 = arith.cmpi eq, %c2_i32_18, %c0_i32_19 : i32
    %c1_i32_20 = arith.constant 1 : i32
    %54 = arith.select %53, %c1_i32_20, %c2_i32_18 : i32
    %55 = vector.broadcast %54 : i32 to vector<32x32xi32>
    %56 = arith.remsi %36, %55 : vector<32x32xi32>
    %c0_i32_21 = arith.constant 0 : i32
    %57 = vector.broadcast %c0_i32_21 : i32 to vector<32x32xi32>
    %58 = arith.cmpi ne, %56, %57 : vector<32x32xi32>
    %c0_i32_22 = arith.constant 0 : i32
    %59 = vector.broadcast %c0_i32_22 : i32 to vector<32x32xi32>
    %60 = arith.cmpi slt, %56, %59 : vector<32x32xi32>
    %c0_i32_23 = arith.constant 0 : i32
    %61 = arith.cmpi slt, %54, %c0_i32_23 : i32
    %62 = vector.broadcast %61 : i1 to vector<32x32xi1>
    %63 = vector.broadcast %62 : vector<32x32xi1> to vector<32x32xi1>
    %64 = arith.xori %60, %63 : vector<32x32xi1>
    %65 = arith.andi %64, %58 : vector<32x32xi1>
    %66 = vector.broadcast %54 : i32 to vector<32x32xi32>
    %67 = arith.addi %56, %66 : vector<32x32xi32>
    %68 = arith.select %65, %67, %56 : vector<32x32xi1>, vector<32x32xi32>
    %69 = arith.cmpi eq, %52, %68 : vector<32x32xi32>
    %cst_24 = arith.constant 0.000000e+00 : f32
    %cst_25 = arith.constant -1.000000e+30 : f32
    %70 = vector.broadcast %cst_24 : f32 to vector<32x32xf32>
    %71 = vector.broadcast %cst_25 : f32 to vector<32x32xf32>
    %72 = arith.select %69, %70, %71 : vector<32x32xi1>, vector<32x32xf32>
    %73 = vector.extract_strided_slice %32 {offsets = [0, 0], sizes = [32, 8], strides = [1, 1]} : vector<32x32xf32> to vector<32x8xf32>
    %74 = vector.extract_strided_slice %33 {offsets = [0, 0], sizes = [32, 8], strides = [1, 1]} : vector<32x32xf32> to vector<32x8xf32>
    %75 = vector.extract_strided_slice %34 {offsets = [0, 0], sizes = [32, 8], strides = [1, 1]} : vector<32x32xf32> to vector<32x8xf32>
    %cst_26 = arith.constant dense<0.000000e+00> : vector<32x32xf32>
    %76 = tpu.matmul %73, %74, %cst_26 {dimension_numbers = #tpu.dot_dimension_numbers<[1], [1], [0], [0], [0, 0, 1, 0], [], []>} : vector<32x8xf32>, vector<32x8xf32>, vector<32x32xf32> -> vector<32x32xf32>
    %77 = arith.addf %76, %72 : vector<32x32xf32>
    %cst_27 = arith.constant dense<0xFF800000> : vector<32xf32>
    %78 = vector.multi_reduction <maximumf>, %77, %cst_27 [1] : vector<32x32xf32> to vector<32xf32>
    %79 = vector.shape_cast %78 : vector<32xf32> to vector<32x1xf32>
    %80 = vector.broadcast %79 : vector<32x1xf32> to vector<32x32xf32>
    %81 = arith.subf %77, %80 : vector<32x32xf32>
    %82 = math.exp %81 : vector<32x32xf32>
    %cst_28 = arith.constant dense<0.000000e+00> : vector<32xf32>
    %83 = vector.multi_reduction <add>, %82, %cst_28 [1] : vector<32x32xf32> to vector<32xf32>
    %84 = vector.shape_cast %83 : vector<32xf32> to vector<32x1xf32>
    %85 = tpu.reciprocal %84 {approx = true} : vector<32x1xf32> -> vector<32x1xf32>
    %86 = vector.broadcast %85 : vector<32x1xf32> to vector<32x32xf32>
    %87 = arith.mulf %82, %86 : vector<32x32xf32>
    %cst_29 = arith.constant dense<0.000000e+00> : vector<32x8xf32>
    %88 = tpu.matmul %87, %75, %cst_29 {dimension_numbers = #tpu.dot_dimension_numbers<[1], [0], [0], [1], [0, 0, 1, 1], [], []>} : vector<32x32xf32>, vector<32x8xf32>, vector<32x8xf32> -> vector<32x8xf32>
    %89 = vector.extract_strided_slice %32 {offsets = [0, 8], sizes = [32, 8], strides = [1, 1]} : vector<32x32xf32> to vector<32x8xf32>
    %90 = vector.extract_strided_slice %33 {offsets = [0, 8], sizes = [32, 8], strides = [1, 1]} : vector<32x32xf32> to vector<32x8xf32>
    %91 = vector.extract_strided_slice %34 {offsets = [0, 8], sizes = [32, 8], strides = [1, 1]} : vector<32x32xf32> to vector<32x8xf32>
    %cst_30 = arith.constant dense<0.000000e+00> : vector<32x32xf32>
    %92 = tpu.matmul %89, %90, %cst_30 {dimension_numbers = #tpu.dot_dimension_numbers<[1], [1], [0], [0], [0, 0, 1, 0], [], []>} : vector<32x8xf32>, vector<32x8xf32>, vector<32x32xf32> -> vector<32x32xf32>
    %93 = arith.addf %92, %72 : vector<32x32xf32>
    %cst_31 = arith.constant dense<0xFF800000> : vector<32xf32>
    %94 = vector.multi_reduction <maximumf>, %93, %cst_31 [1] : vector<32x32xf32> to vector<32xf32>
    %95 = vector.shape_cast %94 : vector<32xf32> to vector<32x1xf32>
    %96 = vector.broadcast %95 : vector<32x1xf32> to vector<32x32xf32>
    %97 = arith.subf %93, %96 : vector<32x32xf32>
    %98 = math.exp %97 : vector<32x32xf32>
    %cst_32 = arith.constant dense<0.000000e+00> : vector<32xf32>
    %99 = vector.multi_reduction <add>, %98, %cst_32 [1] : vector<32x32xf32> to vector<32xf32>
    %100 = vector.shape_cast %99 : vector<32xf32> to vector<32x1xf32>
    %101 = tpu.reciprocal %100 {approx = true} : vector<32x1xf32> -> vector<32x1xf32>
    %102 = vector.broadcast %101 : vector<32x1xf32> to vector<32x32xf32>
    %103 = arith.mulf %98, %102 : vector<32x32xf32>
    %cst_33 = arith.constant dense<0.000000e+00> : vector<32x8xf32>
    %104 = tpu.matmul %103, %91, %cst_33 {dimension_numbers = #tpu.dot_dimension_numbers<[1], [0], [0], [1], [0, 0, 1, 1], [], []>} : vector<32x32xf32>, vector<32x8xf32>, vector<32x8xf32> -> vector<32x8xf32>
    %105 = vector.extract_strided_slice %32 {offsets = [0, 16], sizes = [32, 8], strides = [1, 1]} : vector<32x32xf32> to vector<32x8xf32>
    %106 = vector.extract_strided_slice %33 {offsets = [0, 16], sizes = [32, 8], strides = [1, 1]} : vector<32x32xf32> to vector<32x8xf32>
    %107 = vector.extract_strided_slice %34 {offsets = [0, 16], sizes = [32, 8], strides = [1, 1]} : vector<32x32xf32> to vector<32x8xf32>
    %cst_34 = arith.constant dense<0.000000e+00> : vector<32x32xf32>
    %108 = tpu.matmul %105, %106, %cst_34 {dimension_numbers = #tpu.dot_dimension_numbers<[1], [1], [0], [0], [0, 0, 1, 0], [], []>} : vector<32x8xf32>, vector<32x8xf32>, vector<32x32xf32> -> vector<32x32xf32>
    %109 = arith.addf %108, %72 : vector<32x32xf32>
    %cst_35 = arith.constant dense<0xFF800000> : vector<32xf32>
    %110 = vector.multi_reduction <maximumf>, %109, %cst_35 [1] : vector<32x32xf32> to vector<32xf32>
    %111 = vector.shape_cast %110 : vector<32xf32> to vector<32x1xf32>
    %112 = vector.broadcast %111 : vector<32x1xf32> to vector<32x32xf32>
    %113 = arith.subf %109, %112 : vector<32x32xf32>
    %114 = math.exp %113 : vector<32x32xf32>
    %cst_36 = arith.constant dense<0.000000e+00> : vector<32xf32>
    %115 = vector.multi_reduction <add>, %114, %cst_36 [1] : vector<32x32xf32> to vector<32xf32>
    %116 = vector.shape_cast %115 : vector<32xf32> to vector<32x1xf32>
    %117 = tpu.reciprocal %116 {approx = true} : vector<32x1xf32> -> vector<32x1xf32>
    %118 = vector.broadcast %117 : vector<32x1xf32> to vector<32x32xf32>
    %119 = arith.mulf %114, %118 : vector<32x32xf32>
    %cst_37 = arith.constant dense<0.000000e+00> : vector<32x8xf32>
    %120 = tpu.matmul %119, %107, %cst_37 {dimension_numbers = #tpu.dot_dimension_numbers<[1], [0], [0], [1], [0, 0, 1, 1], [], []>} : vector<32x32xf32>, vector<32x8xf32>, vector<32x8xf32> -> vector<32x8xf32>
    %121 = vector.extract_strided_slice %32 {offsets = [0, 24], sizes = [32, 8], strides = [1, 1]} : vector<32x32xf32> to vector<32x8xf32>
    %122 = vector.extract_strided_slice %33 {offsets = [0, 24], sizes = [32, 8], strides = [1, 1]} : vector<32x32xf32> to vector<32x8xf32>
    %123 = vector.extract_strided_slice %34 {offsets = [0, 24], sizes = [32, 8], strides = [1, 1]} : vector<32x32xf32> to vector<32x8xf32>
    %cst_38 = arith.constant dense<0.000000e+00> : vector<32x32xf32>
    %124 = tpu.matmul %121, %122, %cst_38 {dimension_numbers = #tpu.dot_dimension_numbers<[1], [1], [0], [0], [0, 0, 1, 0], [], []>} : vector<32x8xf32>, vector<32x8xf32>, vector<32x32xf32> -> vector<32x32xf32>
    %125 = arith.addf %124, %72 : vector<32x32xf32>
    %cst_39 = arith.constant dense<0xFF800000> : vector<32xf32>
    %126 = vector.multi_reduction <maximumf>, %125, %cst_39 [1] : vector<32x32xf32> to vector<32xf32>
    %127 = vector.shape_cast %126 : vector<32xf32> to vector<32x1xf32>
    %128 = vector.broadcast %127 : vector<32x1xf32> to vector<32x32xf32>
    %129 = arith.subf %125, %128 : vector<32x32xf32>
    %130 = math.exp %129 : vector<32x32xf32>
    %cst_40 = arith.constant dense<0.000000e+00> : vector<32xf32>
    %131 = vector.multi_reduction <add>, %130, %cst_40 [1] : vector<32x32xf32> to vector<32xf32>
    %132 = vector.shape_cast %131 : vector<32xf32> to vector<32x1xf32>
    %133 = tpu.reciprocal %132 {approx = true} : vector<32x1xf32> -> vector<32x1xf32>
    %134 = vector.broadcast %133 : vector<32x1xf32> to vector<32x32xf32>
    %135 = arith.mulf %130, %134 : vector<32x32xf32>
    %cst_41 = arith.constant dense<0.000000e+00> : vector<32x8xf32>
    %136 = tpu.matmul %135, %123, %cst_41 {dimension_numbers = #tpu.dot_dimension_numbers<[1], [0], [0], [1], [0, 0, 1, 1], [], []>} : vector<32x32xf32>, vector<32x8xf32>, vector<32x8xf32> -> vector<32x8xf32>
    %137 = tpu.concatenate %88, %104, %120, %136 in 1 : vector<32x8xf32>, vector<32x8xf32>, vector<32x8xf32>, vector<32x8xf32> -> vector<32x32xf32>
    %c0_42 = arith.constant 0 : index
    %c0_43 = arith.constant 0 : index
    %138 = vector.load %arg6[%c0_42, %c0_43] : memref<32x32xf32, #tpu.memory_space<vmem>>, vector<32x32xf32>
    %cst_44 = arith.constant dense<0.000000e+00> : vector<32x32xf32>
    %139 = tpu.matmul %137, %138, %cst_44 {dimension_numbers = #tpu.dot_dimension_numbers<[1], [0], [0], [1], [0, 0, 1, 1], [], []>} : vector<32x32xf32>, vector<32x32xf32>, vector<32x32xf32> -> vector<32x32xf32>
    %140 = arith.addf %0, %139 : vector<32x32xf32>
    %c0_45 = arith.constant 0 : index
    %c0_46 = arith.constant 0 : index
    %141 = vector.load %arg7[%c0_45, %c0_46] : memref<1x32xf32, #tpu.memory_space<vmem>>, vector<1x32xf32>
    %142 = vector.broadcast %141 : vector<1x32xf32> to vector<32x32xf32>
    %143 = arith.addf %140, %142 : vector<32x32xf32>
    %cst_47 = arith.constant dense<0.000000e+00> : vector<32xf32>
    %144 = vector.multi_reduction <add>, %143, %cst_47 [1] : vector<32x32xf32> to vector<32xf32>
    %145 = vector.shape_cast %144 : vector<32xf32> to vector<32x1xf32>
    %cst_48 = arith.constant 3.200000e+01 : f32
    %146 = vector.broadcast %cst_48 : f32 to vector<32x1xf32>
    %147 = arith.divf %145, %146 : vector<32x1xf32>
    %148 = vector.broadcast %147 : vector<32x1xf32> to vector<32x32xf32>
    %149 = arith.subf %143, %148 : vector<32x32xf32>
    %150 = arith.mulf %149, %149 : vector<32x32xf32>
    %cst_49 = arith.constant dense<0.000000e+00> : vector<32xf32>
    %151 = vector.multi_reduction <add>, %150, %cst_49 [1] : vector<32x32xf32> to vector<32xf32>
    %152 = vector.shape_cast %151 : vector<32xf32> to vector<32x1xf32>
    %cst_50 = arith.constant 3.200000e+01 : f32
    %153 = vector.broadcast %cst_50 : f32 to vector<32x1xf32>
    %154 = arith.divf %152, %153 : vector<32x1xf32>
    %155 = vector.broadcast %147 : vector<32x1xf32> to vector<32x32xf32>
    %156 = arith.subf %143, %155 : vector<32x32xf32>
    %cst_51 = arith.constant 9.99999974E-6 : f32
    %157 = vector.broadcast %cst_51 : f32 to vector<32x1xf32>
    %158 = arith.addf %154, %157 : vector<32x1xf32>
    %159 = math.rsqrt %158 : vector<32x1xf32>
    %160 = vector.broadcast %159 : vector<32x1xf32> to vector<32x32xf32>
    %161 = arith.mulf %156, %160 : vector<32x32xf32>
    %c0_52 = arith.constant 0 : index
    %c0_53 = arith.constant 0 : index
    %162 = vector.load %arg8[%c0_52, %c0_53] : memref<1x32xf32, #tpu.memory_space<vmem>>, vector<1x32xf32>
    %163 = vector.broadcast %162 : vector<1x32xf32> to vector<32x32xf32>
    %164 = arith.mulf %161, %163 : vector<32x32xf32>
    %c0_54 = arith.constant 0 : index
    %c0_55 = arith.constant 0 : index
    %165 = vector.load %arg9[%c0_54, %c0_55] : memref<1x32xf32, #tpu.memory_space<vmem>>, vector<1x32xf32>
    %166 = vector.broadcast %165 : vector<1x32xf32> to vector<32x32xf32>
    %167 = arith.addf %164, %166 : vector<32x32xf32>
    %c0_56 = arith.constant 0 : index
    %c0_57 = arith.constant 0 : index
    %168 = vector.load %arg10[%c0_56, %c0_57] : memref<32x64xf32, #tpu.memory_space<vmem>>, vector<32x64xf32>
    %cst_58 = arith.constant dense<0.000000e+00> : vector<32x64xf32>
    %169 = tpu.matmul %167, %168, %cst_58 {dimension_numbers = #tpu.dot_dimension_numbers<[1], [0], [0], [1], [0, 0, 1, 1], [], []>} : vector<32x32xf32>, vector<32x64xf32>, vector<32x64xf32> -> vector<32x64xf32>
    %c0_59 = arith.constant 0 : index
    %c0_60 = arith.constant 0 : index
    %170 = vector.load %arg11[%c0_59, %c0_60] : memref<1x64xf32, #tpu.memory_space<vmem>>, vector<1x64xf32>
    %171 = vector.broadcast %170 : vector<1x64xf32> to vector<32x64xf32>
    %172 = arith.addf %169, %171 : vector<32x64xf32>
    %cst_61 = arith.constant 5.000000e-01 : f32
    %173 = vector.broadcast %cst_61 : f32 to vector<32x64xf32>
    %174 = arith.mulf %173, %172 : vector<32x64xf32>
    %cst_62 = arith.constant 0.707106769 : f32
    %175 = vector.broadcast %cst_62 : f32 to vector<32x64xf32>
    %176 = arith.mulf %172, %175 : vector<32x64xf32>
    %177 = math.erf %176 : vector<32x64xf32>
    %cst_63 = arith.constant 1.000000e+00 : f32
    %178 = vector.broadcast %cst_63 : f32 to vector<32x64xf32>
    %179 = arith.addf %178, %177 : vector<32x64xf32>
    %180 = arith.mulf %174, %179 : vector<32x64xf32>
    %c0_64 = arith.constant 0 : index
    %c0_65 = arith.constant 0 : index
    %181 = vector.load %arg12[%c0_64, %c0_65] : memref<64x32xf32, #tpu.memory_space<vmem>>, vector<64x32xf32>
    %cst_66 = arith.constant dense<0.000000e+00> : vector<32x32xf32>
    %182 = tpu.matmul %180, %181, %cst_66 {dimension_numbers = #tpu.dot_dimension_numbers<[1], [0], [0], [1], [0, 0, 1, 1], [], []>} : vector<32x64xf32>, vector<64x32xf32>, vector<32x32xf32> -> vector<32x32xf32>
    %c0_67 = arith.constant 0 : index
    %c0_68 = arith.constant 0 : index
    %183 = vector.load %arg13[%c0_67, %c0_68] : memref<1x32xf32, #tpu.memory_space<vmem>>, vector<1x32xf32>
    %184 = vector.broadcast %183 : vector<1x32xf32> to vector<32x32xf32>
    %185 = arith.addf %182, %184 : vector<32x32xf32>
    %186 = arith.addf %143, %185 : vector<32x32xf32>
    %c0_69 = arith.constant 0 : index
    %c0_70 = arith.constant 0 : index
    %187 = vector.load %arg14[%c0_69, %c0_70] : memref<32x32xf32, #tpu.memory_space<vmem>>, vector<32x32xf32>
    tpu.vector_store %arg14[%c0_69, %c0_70], %186 {strides = array<i32>} : memref<32x32xf32, #tpu.memory_space<vmem>>, vector<32x32xf32>,
    return
  }
  func.func @transform_0(%arg0: i32) -> (i32, i32) {
    %c0_i32 = arith.constant 0 : i32
    %c0_i32_0 = arith.constant 0 : i32
    %c0_i32_1 = arith.constant 0 : i32
    return %c0_i32, %c0_i32_0 : i32, i32
  }
  func.func @transform_1(%arg0: i32) -> (i32, i32) {
    %c0_i32 = arith.constant 0 : i32
    %c0_i32_0 = arith.constant 0 : i32
    %c0_i32_1 = arith.constant 0 : i32
    return %c0_i32, %c0_i32_0 : i32, i32
  }
  func.func @transform_2(%arg0: i32) -> (i32, i32) {
    %c0_i32 = arith.constant 0 : i32
    %c0_i32_0 = arith.constant 0 : i32
    %c0_i32_1 = arith.constant 0 : i32
    return %c0_i32, %c0_i32_0 : i32, i32
  }
  func.func @transform_3(%arg0: i32) -> (i32, i32) {
    %c0_i32 = arith.constant 0 : i32
    %c0_i32_0 = arith.constant 0 : i32
    %c0_i32_1 = arith.constant 0 : i32
    return %c0_i32, %c0_i32_0 : i32, i32
  }
  func.func @transform_4(%arg0: i32) -> (i32, i32) {
    %c0_i32 = arith.constant 0 : i32
    %c0_i32_0 = arith.constant 0 : i32
    %c0_i32_1 = arith.constant 0 : i32
    return %c0_i32, %c0_i32_0 : i32, i32
  }
  func.func @transform_5(%arg0: i32) -> (i32, i32) {
    %c0_i32 = arith.constant 0 : i32
    %c0_i32_0 = arith.constant 0 : i32
    %c0_i32_1 = arith.constant 0 : i32
    return %c0_i32, %c0_i32_0 : i32, i32
  }
  func.func @transform_6(%arg0: i32) -> (i32, i32) {
    %c0_i32 = arith.constant 0 : i32
    %c0_i32_0 = arith.constant 0 : i32
    %c0_i32_1 = arith.constant 0 : i32
    return %c0_i32, %c0_i32_0 : i32, i32
  }
  func.func @transform_7(%arg0: i32) -> (i32, i32) {
    %c0_i32 = arith.constant 0 : i32
    %c0_i32_0 = arith.constant 0 : i32
    %c0_i32_1 = arith.constant 0 : i32
    return %c0_i32, %c0_i32_0 : i32, i32
  }
  func.func @transform_8(%arg0: i32) -> (i32, i32) {
    %c0_i32 = arith.constant 0 : i32
    %c0_i32_0 = arith.constant 0 : i32
    %c0_i32_1 = arith.constant 0 : i32
    return %c0_i32, %c0_i32_0 : i32, i32
  }
  func.func @transform_9(%arg0: i32) -> (i32, i32) {
    %c0_i32 = arith.constant 0 : i32
    %c0_i32_0 = arith.constant 0 : i32
    %c0_i32_1 = arith.constant 0 : i32
    return %c0_i32, %c0_i32_0 : i32, i32
  }
  func.func @transform_10(%arg0: i32) -> (i32, i32) {
    %c0_i32 = arith.constant 0 : i32
    %c0_i32_0 = arith.constant 0 : i32
    %c0_i32_1 = arith.constant 0 : i32
    return %c0_i32, %c0_i32_0 : i32, i32
  }
  func.func @transform_11(%arg0: i32) -> (i32, i32) {
    %c0_i32 = arith.constant 0 : i32
    %c0_i32_0 = arith.constant 0 : i32
    %c0_i32_1 = arith.constant 0 : i32
    return %c0_i32, %c0_i32_0 : i32, i32
  }
  func.func @transform_12(%arg0: i32) -> (i32, i32) {
    %c0_i32 = arith.constant 0 : i32
    %c0_i32_0 = arith.constant 0 : i32
    %c0_i32_1 = arith.constant 0 : i32
    return %c0_i32, %c0_i32_0 : i32, i32
  }
  func.func @transform_13(%arg0: i32) -> (i32, i32) {
    %c0_i32 = arith.constant 0 : i32
    %c0_i32_0 = arith.constant 0 : i32
    %c0_i32_1 = arith.constant 0 : i32
    return %c0_i32, %c0_i32_0 : i32, i32
  }
}

</mosaic_0001>

<llo_original>
// kernel: attention_block.1
$region0: #{attention_block.1}
  #allocation0 [shape = 'u32[]', space=smem, size = 0x4, offset = 0x4, fixed_abs, tag = 'smem constant byte address 0x4 - core index']
  #allocation1 [shape = 'u32[72,128]{1,0:T(1,128)}', space=vmem, size = 0x9000, scoped, tag = 'internal scratch']
  %s0 = inlined_call_operand.vmem [shape: f32[32,32], index: 0, kind: input, shape index: {}]
  %s1 = inlined_call_operand.vmem [shape: f32[1,32], index: 1, kind: input, shape index: {}]
  %s2 = inlined_call_operand.vmem [shape: f32[1,32], index: 2, kind: input, shape index: {}]
  %s3 = inlined_call_operand.vmem [shape: f32[32,96], index: 3, kind: input, shape index: {}]
  %s4 = inlined_call_operand.vmem [shape: f32[1,96], index: 4, kind: input, shape index: {}]
  %s5 = inlined_call_operand.vmem [shape: f32[32,32], index: 5, kind: input, shape index: {}]
  %s6 = inlined_call_operand.vmem [shape: f32[1,32], index: 6, kind: input, shape index: {}]
  %s7 = inlined_call_operand.vmem [shape: f32[1,32], index: 7, kind: input, shape index: {}]
  %s8 = inlined_call_operand.vmem [shape: f32[1,32], index: 8, kind: input, shape index: {}]
  %s9 = inlined_call_operand.hbm [shape: f32[32,64], index: 9, kind: input, shape index: {}]
  %s10 = inlined_call_operand.vmem [shape: f32[1,64], index: 10, kind: input, shape index: {}]
  %s11 = inlined_call_operand.vmem [shape: f32[64,32], index: 11, kind: input, shape index: {}]
  %s12 = inlined_call_operand.vmem [shape: f32[1,32], index: 12, kind: input, shape index: {}]
  %s13 = inlined_call_operand.hbm [shape: f32[32,32], index: 13, kind: output, shape index: {}]
  %s14 = sld [smem:[#allocation0]]
  $region66: #{attention_block.1} parent=0
    _
  %s16 = ssub.s32 1, %s14
  %s17 = scalar_select 0, %s16, %s14
  $region1: #{attention_block.1} parent=0
    #allocation2 [shape = 'u8[16384]{0}', space=vmem, size = 0x4000, scoped, tag = 'input window, operand 9, single buffered']
    #allocation3 [shape = 's32[1]{0}', space=sflag, size = 0x4, scoped, tag = 'scoped memory for attention_block.1']
    #allocation4 [shape = 's32[1]{0}', space=sflag, size = 0x4, scoped, tag = 'scoped memory for attention_block.1']
    #allocation5 [shape = 'u8[16384]{0}', space=vmem, size = 0x4000, scoped, tag = 'output window, operand 0, single buffered']
    %18 = vsyncpa [#allocation3], 0
    %19 = vsyncpa [#allocation4], 0
    // Predicated region
    $region2: #{attention_block.1} parent=1 // pred_check
      _
    $region3: #{attention_block.1} parent=1 // pred_check_branch
      %21 = sbr.rel (0) target = $region5
    $region4: #{attention_block.1} parent=1 // pred_region
      _
    $region5: #{attention_block.1} parent=1 // pred_fallthru
      _
    // Predicated region
    $region6: #{attention_block.1} parent=1 // pred_check
      _
    $region7: #{attention_block.1} parent=1 // pred_check_branch
      %23 = sbr.rel (0) target = $region9
    $region8: #{attention_block.1} parent=1 // pred_region
      _
    $region9: #{attention_block.1} parent=1 // pred_fallthru
      _
    // Predicated region
    $region10: #{attention_block.1} parent=1 // pred_check
      _
    $region11: #{attention_block.1} parent=1 // pred_check_branch
      %25 = sbr.rel (0) target = $region13
    $region12: #{attention_block.1} parent=1 // pred_region
      _
    $region13: #{attention_block.1} parent=1 // pred_fallthru
      _
    // Predicated region
    $region14: #{attention_block.1} parent=1 // pred_check
      _
    $region15: #{attention_block.1} parent=1 // pred_check_branch
      %27 = sbr.rel (0) target = $region17
    $region16: #{attention_block.1} parent=1 // pred_region
      _
    $region17: #{attention_block.1} parent=1 // pred_fallthru
      _
    // Predicated region
    $region18: #{attention_block.1} parent=1 // pred_check
      _
    $region19: #{attention_block.1} parent=1 // pred_check_branch
      %29 = sbr.rel (0) target = $region21
    $region20: #{attention_block.1} parent=1 // pred_region
      _
    $region21: #{attention_block.1} parent=1 // pred_fallthru
      _
    // Predicated region
    $region22: #{attention_block.1} parent=1 // pred_check
      _
    $region23: #{attention_block.1} parent=1 // pred_check_branch
      %31 = sbr.rel (0) target = $region25
    $region24: #{attention_block.1} parent=1 // pred_region
      _
    $region25: #{attention_block.1} parent=1 // pred_fallthru
      _
    // Predicated region
    $region26: #{attention_block.1} parent=1 // pred_check
      _
    $region27: #{attention_block.1} parent=1 // pred_check_branch
      %33 = sbr.rel (0) target = $region29
    $region28: #{attention_block.1} parent=1 // pred_region
      _
    $region29: #{attention_block.1} parent=1 // pred_fallthru
      _
    // Predicated region
    $region30: #{attention_block.1} parent=1 // pred_check
      _
    $region31: #{attention_block.1} parent=1 // pred_check_branch
      %35 = sbr.rel (0) target = $region33
    $region32: #{attention_block.1} parent=1 // pred_region
      _
    $region33: #{attention_block.1} parent=1 // pred_fallthru
      _
    // Predicated region
    $region34: #{attention_block.1} parent=1 // pred_check
      _
    $region35: #{attention_block.1} parent=1 // pred_check_branch
      %37 = sbr.rel (0) target = $region37
    $region36: #{attention_block.1} parent=1 // pred_region
      _
    $region37: #{attention_block.1} parent=1 // pred_fallthru
      _
    // Predicated region
    $region38: #{attention_block.1} parent=1 // pred_check
      _
    $region39: #{attention_block.1} parent=1 // pred_check_branch
      %39 = sbr.rel (0) target = $region41
    $region40: #{attention_block.1} parent=1 // pred_region
      %41 = vsyncadd [#allocation3], 0
      %s42 = sshll.u32 %s9, 4
      %s43 = int_to_ptr.hbm [resolvable:$true] %s42
      %s44 = sshll.u32 [#allocation2], 4
      %s45 = int_to_ptr.vmem [resolvable:$true] %s44
      %50 = dma.hbm_to_vmem [thread:$0]  %s43, 512, %s45, [#allocation3], 128, 128, 8
    $region41: #{attention_block.1} parent=1 // pred_fallthru
      _
    // Predicated region
    $region42: #{attention_block.1} parent=1 // pred_check
      _
    $region43: #{attention_block.1} parent=1 // pred_check_branch
      %52 = sbr.rel (0) target = $region45
    $region44: #{attention_block.1} parent=1 // pred_region
      _
    $region45: #{attention_block.1} parent=1 // pred_fallthru
      _
    // Predicated region
    $region46: #{attention_block.1} parent=1 // pred_check
      _
    $region47: #{attention_block.1} parent=1 // pred_check_branch
      %54 = sbr.rel (0) target = $region49
    $region48: #{attention_block.1} parent=1 // pred_region
      _
    $region49: #{attention_block.1} parent=1 // pred_fallthru
      _
    // Predicated region
    $region50: #{attention_block.1} parent=1 // pred_check
      _
    $region51: #{attention_block.1} parent=1 // pred_check_branch
      %56 = sbr.rel (0) target = $region53
    $region52: #{attention_block.1} parent=1 // pred_region
      _
    $region53: #{attention_block.1} parent=1 // pred_fallthru
      _
    // Predicated region
    $region54: #{attention_block.1} parent=1 // pred_check
      _
    $region55: #{attention_block.1} parent=1 // pred_check_branch
      %58 = sbr.rel (0) target = $region57
    $region56: #{attention_block.1} parent=1 // pred_region
      %60 = dma.done [#allocation3], 512
    $region57: #{attention_block.1} parent=1 // pred_fallthru
      _
    %v61 = vld [vmem:[%s0] sm:$0xff]
    %v62 = vld [vmem:[%s0 + $0x8] sm:$0xff]
    %v63 = vld [vmem:[%s0 + $0x10] sm:$0xff]
    %v64 = vld [vmem:[%s0 + $0x18] sm:$0xff]
    %vm65 = vcmask 261120
    %v66 = vsel %vm65, %v61, 0.0
    %67 = vadd.xlane.f32.xlu0 %v66
    %v68 = vpop.xlane.xlu0 %67
    %v69 = vsel %vm65, %v62, 0.0
    %70 = vadd.xlane.f32.xlu0 %v69
    %v71 = vpop.xlane.xlu0 %70
    %v72 = vsel %vm65, %v63, 0.0
    %73 = vadd.xlane.f32.xlu0 %v72
    %v74 = vpop.xlane.xlu0 %73
    %v75 = vsel %vm65, %v64, 0.0
    %76 = vadd.xlane.f32.xlu0 %v75
    %v77 = vpop.xlane.xlu0 %76
    %v78 = vrcp.pop 32.0
    %v79 = vmul.f32 32.0, %v78
    %v80 = vsub.f32 1.0, %v79
    %v81 = vmul.f32 %v78, %v80
    %v82 = vadd.f32 %v78, %v81
    %vm83 = vweird.f32 %v78
    %v84 = vsel %vm83, %v78, %v82
    %v85 = vmul.f32 %v68, %v84
    %v86 = vmul.f32 %v71, %v84
    %v87 = vmul.f32 %v74, %v84
    %v88 = vmul.f32 %v77, %v84
    %v89 = vsub.f32 %v61, %v85
    %v90 = vsub.f32 %v62, %v86
    %v91 = vsub.f32 %v63, %v87
    %v92 = vsub.f32 %v64, %v88
    %v93 = vmul.f32 %v89, %v89
    %v94 = vmul.f32 %v90, %v90
    %v95 = vmul.f32 %v91, %v91
    %v96 = vmul.f32 %v92, %v92
    %v97 = vsel %vm65, %v93, 0.0
    %98 = vadd.xlane.f32.xlu0 %v97
    %v99 = vpop.xlane.xlu0 %98
    %v100 = vsel %vm65, %v94, 0.0
    %101 = vadd.xlane.f32.xlu0 %v100
    %v102 = vpop.xlane.xlu0 %101
    %v103 = vsel %vm65, %v95, 0.0
    %104 = vadd.xlane.f32.xlu0 %v103
    %v105 = vpop.xlane.xlu0 %104
    %v106 = vsel %vm65, %v96, 0.0
    %107 = vadd.xlane.f32.xlu0 %v106
    %v108 = vpop.xlane.xlu0 %107
    %v109 = vmul.f32 %v99, %v84
    %v110 = vmul.f32 %v102, %v84
    %v111 = vmul.f32 %v105, %v84
    %v112 = vmul.f32 %v108, %v84
    %v113 = vadd.f32 %v109, 1e-05
    %v114 = vadd.f32 %v110, 1e-05
    %v115 = vadd.f32 %v111, 1e-05
    %v116 = vadd.f32 %v112, 1e-05
    %v117 = vrsqrt.pop %v113
    %v118 = vmul.f32 %v117, %v113
    %v119 = vmul.f32 %v118, %v117
    %v120 = vmul.f32 0.5, %v119
    %v121 = vsub.f32 1.5, %v120
    %v122 = vmul.f32 %v117, %v121
    %vm123 = vweird.f32 %v113
    %vm124 = vweird.f32 %v117
    %vm125 = vmor %vm123, %vm124
    %v126 = vsel %vm125, %v117, %v122
    %v127 = vrsqrt.pop %v114
    %v128 = vmul.f32 %v127, %v114
    %v129 = vmul.f32 %v128, %v127
    %v130 = vmul.f32 0.5, %v129
    %v131 = vsub.f32 1.5, %v130
    %v132 = vmul.f32 %v127, %v131
    %vm133 = vweird.f32 %v114
    %vm134 = vweird.f32 %v127
    %vm135 = vmor %vm133, %vm134
    %v136 = vsel %vm135, %v127, %v132
    %v137 = vrsqrt.pop %v115
    %v138 = vmul.f32 %v137, %v115
    %v139 = vmul.f32 %v138, %v137
    %v140 = vmul.f32 0.5, %v139
    %v141 = vsub.f32 1.5, %v140
    %v142 = vmul.f32 %v137, %v141
    %vm143 = vweird.f32 %v115
    %vm144 = vweird.f32 %v137
    %vm145 = vmor %vm143, %vm144
    %v146 = vsel %vm145, %v137, %v142
    %v147 = vrsqrt.pop %v116
    %v148 = vmul.f32 %v147, %v116
    %v149 = vmul.f32 %v148, %v147
    %v150 = vmul.f32 0.5, %v149
    %v151 = vsub.f32 1.5, %v150
    %v152 = vmul.f32 %v147, %v151
    %vm153 = vweird.f32 %v116
    %vm154 = vweird.f32 %v147
    %vm155 = vmor %vm153, %vm154
    %v156 = vsel %vm155, %v147, %v152
    %v157 = vmul.f32 %v89, %v126
    %v158 = vmul.f32 %v90, %v136
    %v159 = vmul.f32 %v91, %v146
    %v160 = vmul.f32 %v92, %v156
    %v161 = vld [vmem:[%s1] sm:$0x1]
    %v163 = vperm.slane %v161, 0
    %v165 = vmul.f32 %v157, %v163
    %v166 = vmul.f32 %v158, %v163
    %v167 = vmul.f32 %v159, %v163
    %v168 = vmul.f32 %v160, %v163
    %v169 = vld [vmem:[%s2] sm:$0x1]
    %v171 = vperm.slane %v169, 0
    %v173 = vadd.f32 %v165, %v171
    %v174 = vadd.f32 %v166, %v171
    %v175 = vadd.f32 %v167, %v171
    %v176 = vadd.f32 %v168, %v171
    %v177 = vld [vmem:[%s3] sm:$0xff]
    %v178 = vld [vmem:[%s3 + $0x8] sm:$0xff]
    %v179 = vld [vmem:[%s3 + $0x10] sm:$0xff]
    %v180 = vld [vmem:[%s3 + $0x18] sm:$0xff]
    %v181 = vld [vmem:[%s4] sm:$0x1]
    %v183 = vperm.slane %v181, 0
    %v186 = vsel %vm65, %v173, 0
    %v189 = vsel %vm65, %v174, 0
    %v192 = vsel %vm65, %v175, 0
    %v195 = vsel %vm65, %v176, 0
    %197 = vmatpush.msra.mxu0 0.0
    %198 = vmatpush.msra.mxu0 0.0
    %199 = vmatpush.msra.mxu0 0.0
    %200 = vmatpush.msra.mxu0 0.0
    %201 = vmatpush.msra.mxu0 0.0
    %202 = vmatpush.msra.mxu0 0.0
    %203 = vmatpush.msra.mxu0 0.0
    %204 = vmatpush.msra.mxu0 0.0
    %205 = vmatpush.msra.mxu0 0.0
    %206 = vmatpush.msra.mxu0 0.0
    %207 = vmatpush.msra.mxu0 0.0
    %208 = vmatpush.msra.mxu0 0.0
    %209 = vmatpush.msra.mxu0 %v180
    %210 = vmatpush.msra.mxu0 %v179
    %211 = vmatpush.msra.mxu0 %v178
    %212 = vmatpush.msra.mxu0 %v177
    %213 = vmatmul.f32.gmra.mxu0 %v186
    %v214 = vpop.f32.mrf.mxu0
    %v215 = vadd.f32 %v183, %v214
    %216 = vmatmul.f32.gmra.mxu0 %v189
    %v217 = vpop.f32.mrf.mxu0
    %v218 = vadd.f32 %v183, %v217
    %219 = vmatmul.f32.gmra.mxu0 %v192
    %v220 = vpop.f32.mrf.mxu0
    %v221 = vadd.f32 %v183, %v220
    %222 = vmatmul.f32.gmra.mxu0 %v195
    %v223 = vpop.f32.mrf.mxu0
    %v224 = vadd.f32 %v183, %v223
    %225 = vdwg.mxu0
    %v226 = vmul.f32 %v215, 0.35355338
    %v227 = vmul.f32 %v218, 0.35355338
    %v228 = vmul.f32 %v221, 0.35355338
    %v229 = vmul.f32 %v224, 0.35355338
    %v230 = vlaneseq
    %v231 = vshrl.u32 %v230, 7
    %v232 = vadd.s32 %v231, 8
    %v233 = vadd.s32 %v231, 16
    %v234 = vadd.s32 %v231, 24
    %v235 = vlaneseq
    %v236 = vand.u32 %v235, 127
    %vm237 = vcmp.lt.s32.totalorder %v231, 0
    %v238 = vsub.s32 0, %v231
    %v239 = vsel %vm237, %v238, %v231
    %v240 = vshrl.u32 %v239, 1
    %v241 = vand.u32 %v239, 1
    %v242 = vsub.s32 0, %v241
    %v243 = vsel %vm237, %v242, %v241
    %vm244 = vcmp.lt.s32.totalorder %v232, 0
    %v245 = vsub.s32 0, %v232
    %v246 = vsel %vm244, %v245, %v232
    %v247 = vshrl.u32 %v246, 1
    %v248 = vand.u32 %v246, 1
    %v249 = vsub.s32 0, %v248
    %v250 = vsel %vm244, %v249, %v248
    %vm251 = vcmp.lt.s32.totalorder %v233, 0
    %v252 = vsub.s32 0, %v233
    %v253 = vsel %vm251, %v252, %v233
    %v254 = vshrl.u32 %v253, 1
    %v255 = vand.u32 %v253, 1
    %v256 = vsub.s32 0, %v255
    %v257 = vsel %vm251, %v256, %v255
    %vm258 = vcmp.lt.s32.totalorder %v234, 0
    %v259 = vsub.s32 0, %v234
    %v260 = vsel %vm258, %v259, %v234
    %v261 = vshrl.u32 %v260, 1
    %v262 = vand.u32 %v260, 1
    %v263 = vsub.s32 0, %v262
    %v264 = vsel %vm258, %v263, %v262
    %vm265 = vcmp.ne.s32.totalorder %v243, 0
    %vm266 = vcmp.ne.s32.totalorder %v250, 0
    %vm267 = vcmp.ne.s32.totalorder %v257, 0
    %vm268 = vcmp.ne.s32.totalorder %v264, 0
    %vm269 = vcmp.lt.s32.totalorder %v243, 0
    %vm270 = vcmp.lt.s32.totalorder %v250, 0
    %vm271 = vcmp.lt.s32.totalorder %v257, 0
    %vm272 = vcmp.lt.s32.totalorder %v264, 0
    %vm273 = vmand %vm269, %vm265
    %vm274 = vmand %vm270, %vm266
    %vm275 = vmand %vm271, %vm267
    %vm276 = vmand %vm272, %vm268
    %v277 = vadd.s32 %v243, 2
    %v278 = vadd.s32 %v250, 2
    %v279 = vadd.s32 %v257, 2
    %v280 = vadd.s32 %v264, 2
    %v281 = vsel %vm273, %v277, %v243
    %v282 = vsel %vm274, %v278, %v250
    %v283 = vsel %vm275, %v279, %v257
    %v284 = vsel %vm276, %v280, %v264
    %vm285 = vcmp.lt.s32.totalorder %v236, 0
    %v286 = vsub.s32 0, %v236
    %v287 = vsel %vm285, %v286, %v236
    %v288 = vshrl.u32 %v287, 1
    %v289 = vand.u32 %v287, 1
    %v290 = vsub.s32 0, %v289
    %v291 = vsel %vm285, %v290, %v289
    %vm292 = vcmp.ne.s32.totalorder %v291, 0
    %vm293 = vcmp.lt.s32.totalorder %v291, 0
    %vm294 = vmand %vm293, %vm292
    %v295 = vadd.s32 %v291, 2
    %v296 = vsel %vm294, %v295, %v291
    %vm297 = vcmp.eq.s32.totalorder %v281, %v296
    %vm298 = vcmp.eq.s32.totalorder %v282, %v296
    %vm299 = vcmp.eq.s32.totalorder %v283, %v296
    %vm300 = vcmp.eq.s32.totalorder %v284, %v296
    %v301 = vsel %vm297, 0.0, -1e+30
    %v302 = vsel %vm298, 0.0, -1e+30
    %v303 = vsel %vm299, 0.0, -1e+30
    %v304 = vsel %vm300, 0.0, -1e+30
    %309 = vrot.lane.b32.xlu0 %v215, 96
    %v310 = vpop.permute.xlu0 %309
    %311 = vrot.lane.b32.xlu0 %v218, 96
    %v312 = vpop.permute.xlu0 %311
    %313 = vrot.lane.b32.xlu0 %v221, 96
    %v314 = vpop.permute.xlu0 %313
    %315 = vrot.lane.b32.xlu0 %v224, 96
    %v316 = vpop.permute.xlu0 %315
    %vm317 = vcmask 64512
    %v319 = vsel %vm317, %v226, 0
    %v322 = vsel %vm317, %v227, 0
    %v325 = vsel %vm317, %v228, 0
    %v328 = vsel %vm317, %v229, 0
    %v330 = vsel %vm317, %v310, 0
    %v332 = vsel %vm317, %v312, 0
    %v334 = vsel %vm317, %v314, 0
    %v336 = vsel %vm317, %v316, 0
    %338 = vmatpush.xpose.msra.mxu0 0.0
    %339 = vmatpush.xpose.msra.mxu0 0.0
    %340 = vmatpush.xpose.msra.mxu0 0.0
    %341 = vmatpush.xpose.msra.mxu0 0.0
    %342 = vmatpush.xpose.msra.mxu0 0.0
    %343 = vmatpush.xpose.msra.mxu0 0.0
    %344 = vmatpush.xpose.msra.mxu0 0.0
    %345 = vmatpush.xpose.msra.mxu0 0.0
    %346 = vmatpush.xpose.msra.mxu0 0.0
    %347 = vmatpush.xpose.msra.mxu0 0.0
    %348 = vmatpush.xpose.msra.mxu0 0.0
    %349 = vmatpush.xpose.msra.mxu0 0.0
    %350 = vmatpush.xpose.msra.mxu0 %v336
    %351 = vmatpush.xpose.msra.mxu0 %v334
    %352 = vmatpush.xpose.msra.mxu0 %v332
    %353 = vmatpush.xpose.msra.mxu0 %v330
    %354 = vmatmul.f32.gmra.mxu0 %v319
    %v355 = vpop.f32.mrf.mxu0
    %v356 = vadd.f32 %v301, %v355
    %357 = vmatmul.f32.gmra.mxu0 %v322
    %v358 = vpop.f32.mrf.mxu0
    %v359 = vadd.f32 %v302, %v358
    %360 = vmatmul.f32.gmra.mxu0 %v325
    %v361 = vpop.f32.mrf.mxu0
    %v362 = vadd.f32 %v303, %v361
    %363 = vmatmul.f32.gmra.mxu0 %v328
    %v364 = vpop.f32.mrf.mxu0
    %v365 = vadd.f32 %v304, %v364
    %366 = vdwg.mxu0
    %v367 = vsel %vm65, %v356, -inf
    %368 = vmax.xlane.f32.xlu0 %v367
    %v369 = vpop.xlane.xlu0 %368
    %v370 = vsel %vm65, %v359, -inf
    %371 = vmax.xlane.f32.xlu0 %v370
    %v372 = vpop.xlane.xlu0 %371
    %v373 = vsel %vm65, %v362, -inf
    %374 = vmax.xlane.f32.xlu0 %v373
    %v375 = vpop.xlane.xlu0 %374
    %v376 = vsel %vm65, %v365, -inf
    %377 = vmax.xlane.f32.xlu0 %v376
    %v378 = vpop.xlane.xlu0 %377
    %v379 = vsub.f32 %v356, %v369
    %v380 = vsub.f32 %v359, %v372
    %v381 = vsub.f32 %v362, %v375
    %v382 = vsub.f32 %v365, %v378
    %v383 = vmul.f32 %v379, 1.442695
    %v384 = vpow.pop %v383
    %v385 = vmul.f32 %v380, 1.442695
    %v386 = vpow.pop %v385
    %v387 = vmul.f32 %v381, 1.442695
    %v388 = vpow.pop %v387
    %v389 = vmul.f32 %v382, 1.442695
    %v390 = vpow.pop %v389
    %v391 = vsel %vm65, %v384, 0.0
    %392 = vadd.xlane.f32.xlu0 %v391
    %v393 = vpop.xlane.xlu0 %392
    %v394 = vsel %vm65, %v386, 0.0
    %395 = vadd.xlane.f32.xlu0 %v394
    %v396 = vpop.xlane.xlu0 %395
    %v397 = vsel %vm65, %v388, 0.0
    %398 = vadd.xlane.f32.xlu0 %v397
    %v399 = vpop.xlane.xlu0 %398
    %v400 = vsel %vm65, %v390, 0.0
    %401 = vadd.xlane.f32.xlu0 %v400
    %v402 = vpop.xlane.xlu0 %401
    %v403 = vrcp.pop %v393
    %v404 = vrcp.pop %v396
    %v405 = vrcp.pop %v399
    %v406 = vrcp.pop %v402
    %v407 = vmul.f32 %v384, %v403
    %v408 = vmul.f32 %v386, %v404
    %v409 = vmul.f32 %v388, %v405
    %v410 = vmul.f32 %v390, %v406
    %411 = vrot.lane.b32.xlu0 %v215, 64
    %v412 = vpop.permute.xlu0 %411
    %413 = vrot.lane.b32.xlu0 %v218, 64
    %v414 = vpop.permute.xlu0 %413
    %415 = vrot.lane.b32.xlu0 %v221, 64
    %v416 = vpop.permute.xlu0 %415
    %417 = vrot.lane.b32.xlu0 %v224, 64
    %v418 = vpop.permute.xlu0 %417
    %v424 = vsel %vm65, %v407, 0
    %v427 = vsel %vm65, %v408, 0
    %v430 = vsel %vm65, %v409, 0
    %v433 = vsel %vm65, %v410, 0
    %435 = vmatpush.msra.mxu0 0.0
    %436 = vmatpush.msra.mxu0 0.0
    %437 = vmatpush.msra.mxu0 0.0
    %438 = vmatpush.msra.mxu0 0.0
    %439 = vmatpush.msra.mxu0 0.0
    %440 = vmatpush.msra.mxu0 0.0
    %441 = vmatpush.msra.mxu0 0.0
    %442 = vmatpush.msra.mxu0 0.0
    %443 = vmatpush.msra.mxu0 0.0
    %444 = vmatpush.msra.mxu0 0.0
    %445 = vmatpush.msra.mxu0 0.0
    %446 = vmatpush.msra.mxu0 0.0
    %447 = vmatpush.msra.mxu0 %v418
    %448 = vmatpush.msra.mxu0 %v416
    %449 = vmatpush.msra.mxu0 %v414
    %450 = vmatpush.msra.mxu0 %v412
    %451 = vmatmul.f32.gmra.mxu0 %v424
    %v452 = vpop.f32.mrf.mxu0
    %v453 = vadd.f32 0.0, %v452
    %454 = vmatmul.f32.gmra.mxu0 %v427
    %v455 = vpop.f32.mrf.mxu0
    %v456 = vadd.f32 0.0, %v455
    %457 = vmatmul.f32.gmra.mxu0 %v430
    %v458 = vpop.f32.mrf.mxu0
    %v459 = vadd.f32 0.0, %v458
    %460 = vmatmul.f32.gmra.mxu0 %v433
    %v461 = vpop.f32.mrf.mxu0
    %v462 = vadd.f32 0.0, %v461
    %463 = vdwg.mxu0
    %464 = vrot.lane.b32.xlu0 %v226, 120
    %v465 = vpop.permute.xlu0 %464
    %466 = vrot.lane.b32.xlu0 %v227, 120
    %v467 = vpop.permute.xlu0 %466
    %468 = vrot.lane.b32.xlu0 %v228, 120
    %v469 = vpop.permute.xlu0 %468
    %470 = vrot.lane.b32.xlu0 %v229, 120
    %v471 = vpop.permute.xlu0 %470
    %472 = vrot.lane.b32.xlu0 %v215, 88
    %v473 = vpop.permute.xlu0 %472
    %474 = vrot.lane.b32.xlu0 %v218, 88
    %v475 = vpop.permute.xlu0 %474
    %476 = vrot.lane.b32.xlu0 %v221, 88
    %v477 = vpop.permute.xlu0 %476
    %478 = vrot.lane.b32.xlu0 %v224, 88
    %v479 = vpop.permute.xlu0 %478
    %v480 = vsel %vm317, %v465, 0
    %v482 = vsel %vm317, %v467, 0
    %v484 = vsel %vm317, %v469, 0
    %v486 = vsel %vm317, %v471, 0
    %v488 = vsel %vm317, %v473, 0
    %v490 = vsel %vm317, %v475, 0
    %v492 = vsel %vm317, %v477, 0
    %v494 = vsel %vm317, %v479, 0
    %496 = vmatpush.xpose.msra.mxu0 0.0
    %497 = vmatpush.xpose.msra.mxu0 0.0
    %498 = vmatpush.xpose.msra.mxu0 0.0
    %499 = vmatpush.xpose.msra.mxu0 0.0
    %500 = vmatpush.xpose.msra.mxu0 0.0
    %501 = vmatpush.xpose.msra.mxu0 0.0
    %502 = vmatpush.xpose.msra.mxu0 0.0
    %503 = vmatpush.xpose.msra.mxu0 0.0
    %504 = vmatpush.xpose.msra.mxu0 0.0
    %505 = vmatpush.xpose.msra.mxu0 0.0
    %506 = vmatpush.xpose.msra.mxu0 0.0
    %507 = vmatpush.xpose.msra.mxu0 0.0
    %508 = vmatpush.xpose.msra.mxu0 %v494
    %509 = vmatpush.xpose.msra.mxu0 %v492
    %510 = vmatpush.xpose.msra.mxu0 %v490
    %511 = vmatpush.xpose.msra.mxu0 %v488
    %512 = vmatmul.f32.gmra.mxu0 %v480
    %v513 = vpop.f32.mrf.mxu0
    %v514 = vadd.f32 %v301, %v513
    %515 = vmatmul.f32.gmra.mxu0 %v482
    %v516 = vpop.f32.mrf.mxu0
    %v517 = vadd.f32 %v302, %v516
    %518 = vmatmul.f32.gmra.mxu0 %v484
    %v519 = vpop.f32.mrf.mxu0
    %v520 = vadd.f32 %v303, %v519
    %521 = vmatmul.f32.gmra.mxu0 %v486
    %v522 = vpop.f32.mrf.mxu0
    %v523 = vadd.f32 %v304, %v522
    %524 = vdwg.mxu0
    %v525 = vsel %vm65, %v514, -inf
    %526 = vmax.xlane.f32.xlu0 %v525
    %v527 = vpop.xlane.xlu0 %526
    %v528 = vsel %vm65, %v517, -inf
    %529 = vmax.xlane.f32.xlu0 %v528
    %v530 = vpop.xlane.xlu0 %529
    %v531 = vsel %vm65, %v520, -inf
    %532 = vmax.xlane.f32.xlu0 %v531
    %v533 = vpop.xlane.xlu0 %532
    %v534 = vsel %vm65, %v523, -inf
    %535 = vmax.xlane.f32.xlu0 %v534
    %v536 = vpop.xlane.xlu0 %535
    %v537 = vsub.f32 %v514, %v527
    %v538 = vsub.f32 %v517, %v530
    %v539 = vsub.f32 %v520, %v533
    %v540 = vsub.f32 %v523, %v536
    %v541 = vmul.f32 %v537, 1.442695
    %v542 = vpow.pop %v541
    %v543 = vmul.f32 %v538, 1.442695
    %v544 = vpow.pop %v543
    %v545 = vmul.f32 %v539, 1.442695
    %v546 = vpow.pop %v545
    %v547 = vmul.f32 %v540, 1.442695
    %v548 = vpow.pop %v547
    %v549 = vsel %vm65, %v542, 0.0
    %550 = vadd.xlane.f32.xlu0 %v549
    %v551 = vpop.xlane.xlu0 %550
    %v552 = vsel %vm65, %v544, 0.0
    %553 = vadd.xlane.f32.xlu0 %v552
    %v554 = vpop.xlane.xlu0 %553
    %v555 = vsel %vm65, %v546, 0.0
    %556 = vadd.xlane.f32.xlu0 %v555
    %v557 = vpop.xlane.xlu0 %556
    %v558 = vsel %vm65, %v548, 0.0
    %559 = vadd.xlane.f32.xlu0 %v558
    %v560 = vpop.xlane.xlu0 %559
    %v561 = vrcp.pop %v551
    %v562 = vrcp.pop %v554
    %v563 = vrcp.pop %v557
    %v564 = vrcp.pop %v560
    %v565 = vmul.f32 %v542, %v561
    %v566 = vmul.f32 %v544, %v562
    %v567 = vmul.f32 %v546, %v563
    %v568 = vmul.f32 %v548, %v564
    %569 = vrot.lane.b32.xlu0 %v215, 56
    %v570 = vpop.permute.xlu0 %569
    %571 = vrot.lane.b32.xlu0 %v218, 56
    %v572 = vpop.permute.xlu0 %571
    %573 = vrot.lane.b32.xlu0 %v221, 56
    %v574 = vpop.permute.xlu0 %573
    %575 = vrot.lane.b32.xlu0 %v224, 56
    %v576 = vpop.permute.xlu0 %575
    %v582 = vsel %vm65, %v565, 0
    %v585 = vsel %vm65, %v566, 0
    %v588 = vsel %vm65, %v567, 0
    %v591 = vsel %vm65, %v568, 0
    %593 = vmatpush.msra.mxu0 0.0
    %594 = vmatpush.msra.mxu0 0.0
    %595 = vmatpush.msra.mxu0 0.0
    %596 = vmatpush.msra.mxu0 0.0
    %597 = vmatpush.msra.mxu0 0.0
    %598 = vmatpush.msra.mxu0 0.0
    %599 = vmatpush.msra.mxu0 0.0
    %600 = vmatpush.msra.mxu0 0.0
    %601 = vmatpush.msra.mxu0 0.0
    %602 = vmatpush.msra.mxu0 0.0
    %603 = vmatpush.msra.mxu0 0.0
    %604 = vmatpush.msra.mxu0 0.0
    %605 = vmatpush.msra.mxu0 %v576
    %606 = vmatpush.msra.mxu0 %v574
    %607 = vmatpush.msra.mxu0 %v572
    %608 = vmatpush.msra.mxu0 %v570
    %609 = vmatmul.f32.gmra.mxu0 %v582
    %v610 = vpop.f32.mrf.mxu0
    %v611 = vadd.f32 0.0, %v610
    %612 = vmatmul.f32.gmra.mxu0 %v585
    %v613 = vpop.f32.mrf.mxu0
    %v614 = vadd.f32 0.0, %v613
    %615 = vmatmul.f32.gmra.mxu0 %v588
    %v616 = vpop.f32.mrf.mxu0
    %v617 = vadd.f32 0.0, %v616
    %618 = vmatmul.f32.gmra.mxu0 %v591
    %v619 = vpop.f32.mrf.mxu0
    %v620 = vadd.f32 0.0, %v619
    %621 = vdwg.mxu0
    %622 = vrot.lane.b32.xlu0 %v226, 112
    %v623 = vpop.permute.xlu0 %622
    %624 = vrot.lane.b32.xlu0 %v227, 112
    %v625 = vpop.permute.xlu0 %624
    %626 = vrot.lane.b32.xlu0 %v228, 112
    %v627 = vpop.permute.xlu0 %626
    %628 = vrot.lane.b32.xlu0 %v229, 112
    %v629 = vpop.permute.xlu0 %628
    %630 = vrot.lane.b32.xlu0 %v215, 80
    %v631 = vpop.permute.xlu0 %630
    %632 = vrot.lane.b32.xlu0 %v218, 80
    %v633 = vpop.permute.xlu0 %632
    %634 = vrot.lane.b32.xlu0 %v221, 80
    %v635 = vpop.permute.xlu0 %634
    %636 = vrot.lane.b32.xlu0 %v224, 80
    %v637 = vpop.permute.xlu0 %636
    %v638 = vsel %vm317, %v623, 0
    %v640 = vsel %vm317, %v625, 0
    %v642 = vsel %vm317, %v627, 0
    %v644 = vsel %vm317, %v629, 0
    %v646 = vsel %vm317, %v631, 0
    %v648 = vsel %vm317, %v633, 0
    %v650 = vsel %vm317, %v635, 0
    %v652 = vsel %vm317, %v637, 0
    %654 = vmatpush.xpose.msra.mxu0 0.0
    %655 = vmatpush.xpose.msra.mxu0 0.0
    %656 = vmatpush.xpose.msra.mxu0 0.0
    %657 = vmatpush.xpose.msra.mxu0 0.0
    %658 = vmatpush.xpose.msra.mxu0 0.0
    %659 = vmatpush.xpose.msra.mxu0 0.0
    %660 = vmatpush.xpose.msra.mxu0 0.0
    %661 = vmatpush.xpose.msra.mxu0 0.0
    %662 = vmatpush.xpose.msra.mxu0 0.0
    %663 = vmatpush.xpose.msra.mxu0 0.0
    %664 = vmatpush.xpose.msra.mxu0 0.0
    %665 = vmatpush.xpose.msra.mxu0 0.0
    %666 = vmatpush.xpose.msra.mxu0 %v652
    %667 = vmatpush.xpose.msra.mxu0 %v650
    %668 = vmatpush.xpose.msra.mxu0 %v648
    %669 = vmatpush.xpose.msra.mxu0 %v646
    %670 = vmatmul.f32.gmra.mxu0 %v638
    %v671 = vpop.f32.mrf.mxu0
    %v672 = vadd.f32 %v301, %v671
    %673 = vmatmul.f32.gmra.mxu0 %v640
    %v674 = vpop.f32.mrf.mxu0
    %v675 = vadd.f32 %v302, %v674
    %676 = vmatmul.f32.gmra.mxu0 %v642
    %v677 = vpop.f32.mrf.mxu0
    %v678 = vadd.f32 %v303, %v677
    %679 = vmatmul.f32.gmra.mxu0 %v644
    %v680 = vpop.f32.mrf.mxu0
    %v681 = vadd.f32 %v304, %v680
    %682 = vdwg.mxu0
    %v683 = vsel %vm65, %v672, -inf
    %684 = vmax.xlane.f32.xlu0 %v683
    %v685 = vpop.xlane.xlu0 %684
    %v686 = vsel %vm65, %v675, -inf
    %687 = vmax.xlane.f32.xlu0 %v686
    %v688 = vpop.xlane.xlu0 %687
    %v689 = vsel %vm65, %v678, -inf
    %690 = vmax.xlane.f32.xlu0 %v689
    %v691 = vpop.xlane.xlu0 %690
    %v692 = vsel %vm65, %v681, -inf
    %693 = vmax.xlane.f32.xlu0 %v692
    %v694 = vpop.xlane.xlu0 %693
    %v695 = vsub.f32 %v672, %v685
    %v696 = vsub.f32 %v675, %v688
    %v697 = vsub.f32 %v678, %v691
    %v698 = vsub.f32 %v681, %v694
    %v699 = vmul.f32 %v695, 1.442695
    %v700 = vpow.pop %v699
    %v701 = vmul.f32 %v696, 1.442695
    %v702 = vpow.pop %v701
    %v703 = vmul.f32 %v697, 1.442695
    %v704 = vpow.pop %v703
    %v705 = vmul.f32 %v698, 1.442695
    %v706 = vpow.pop %v705
    %v707 = vsel %vm65, %v700, 0.0
    %708 = vadd.xlane.f32.xlu0 %v707
    %v709 = vpop.xlane.xlu0 %708
    %v710 = vsel %vm65, %v702, 0.0
    %711 = vadd.xlane.f32.xlu0 %v710
    %v712 = vpop.xlane.xlu0 %711
    %v713 = vsel %vm65, %v704, 0.0
    %714 = vadd.xlane.f32.xlu0 %v713
    %v715 = vpop.xlane.xlu0 %714
    %v716 = vsel %vm65, %v706, 0.0
    %717 = vadd.xlane.f32.xlu0 %v716
    %v718 = vpop.xlane.xlu0 %717
    %v719 = vrcp.pop %v709
    %v720 = vrcp.pop %v712
    %v721 = vrcp.pop %v715
    %v722 = vrcp.pop %v718
    %v723 = vmul.f32 %v700, %v719
    %v724 = vmul.f32 %v702, %v720
    %v725 = vmul.f32 %v704, %v721
    %v726 = vmul.f32 %v706, %v722
    %727 = vrot.lane.b32.xlu0 %v215, 48
    %v728 = vpop.permute.xlu0 %727
    %729 = vrot.lane.b32.xlu0 %v218, 48
    %v730 = vpop.permute.xlu0 %729
    %731 = vrot.lane.b32.xlu0 %v221, 48
    %v732 = vpop.permute.xlu0 %731
    %733 = vrot.lane.b32.xlu0 %v224, 48
    %v734 = vpop.permute.xlu0 %733
    %v740 = vsel %vm65, %v723, 0
    %v743 = vsel %vm65, %v724, 0
    %v746 = vsel %vm65, %v725, 0
    %v749 = vsel %vm65, %v726, 0
    %751 = vmatpush.msra.mxu0 0.0
    %752 = vmatpush.msra.mxu0 0.0
    %753 = vmatpush.msra.mxu0 0.0
    %754 = vmatpush.msra.mxu0 0.0
    %755 = vmatpush.msra.mxu0 0.0
    %756 = vmatpush.msra.mxu0 0.0
    %757 = vmatpush.msra.mxu0 0.0
    %758 = vmatpush.msra.mxu0 0.0
    %759 = vmatpush.msra.mxu0 0.0
    %760 = vmatpush.msra.mxu0 0.0
    %761 = vmatpush.msra.mxu0 0.0
    %762 = vmatpush.msra.mxu0 0.0
    %763 = vmatpush.msra.mxu0 %v734
    %764 = vmatpush.msra.mxu0 %v732
    %765 = vmatpush.msra.mxu0 %v730
    %766 = vmatpush.msra.mxu0 %v728
    %767 = vmatmul.f32.gmra.mxu0 %v740
    %v768 = vpop.f32.mrf.mxu0
    %v769 = vadd.f32 0.0, %v768
    %770 = vmatmul.f32.gmra.mxu0 %v743
    %v771 = vpop.f32.mrf.mxu0
    %v772 = vadd.f32 0.0, %v771
    %773 = vmatmul.f32.gmra.mxu0 %v746
    %v774 = vpop.f32.mrf.mxu0
    %v775 = vadd.f32 0.0, %v774
    %776 = vmatmul.f32.gmra.mxu0 %v749
    %v777 = vpop.f32.mrf.mxu0
    %v778 = vadd.f32 0.0, %v777
    %779 = vdwg.mxu0
    %780 = vrot.lane.b32.xlu0 %v226, 104
    %v781 = vpop.permute.xlu0 %780
    %782 = vrot.lane.b32.xlu0 %v227, 104
    %v783 = vpop.permute.xlu0 %782
    %784 = vrot.lane.b32.xlu0 %v228, 104
    %v785 = vpop.permute.xlu0 %784
    %786 = vrot.lane.b32.xlu0 %v229, 104
    %v787 = vpop.permute.xlu0 %786
    %788 = vrot.lane.b32.xlu0 %v215, 72
    %v789 = vpop.permute.xlu0 %788
    %790 = vrot.lane.b32.xlu0 %v218, 72
    %v791 = vpop.permute.xlu0 %790
    %792 = vrot.lane.b32.xlu0 %v221, 72
    %v793 = vpop.permute.xlu0 %792
    %794 = vrot.lane.b32.xlu0 %v224, 72
    %v795 = vpop.permute.xlu0 %794
    %v796 = vsel %vm317, %v781, 0
    %v798 = vsel %vm317, %v783, 0
    %v800 = vsel %vm317, %v785, 0
    %v802 = vsel %vm317, %v787, 0
    %v804 = vsel %vm317, %v789, 0
    %v806 = vsel %vm317, %v791, 0
    %v808 = vsel %vm317, %v793, 0
    %v810 = vsel %vm317, %v795, 0
    %812 = vmatpush.xpose.msra.mxu0 0.0
    %813 = vmatpush.xpose.msra.mxu0 0.0
    %814 = vmatpush.xpose.msra.mxu0 0.0
    %815 = vmatpush.xpose.msra.mxu0 0.0
    %816 = vmatpush.xpose.msra.mxu0 0.0
    %817 = vmatpush.xpose.msra.mxu0 0.0
    %818 = vmatpush.xpose.msra.mxu0 0.0
    %819 = vmatpush.xpose.msra.mxu0 0.0
    %820 = vmatpush.xpose.msra.mxu0 0.0
    %821 = vmatpush.xpose.msra.mxu0 0.0
    %822 = vmatpush.xpose.msra.mxu0 0.0
    %823 = vmatpush.xpose.msra.mxu0 0.0
    %824 = vmatpush.xpose.msra.mxu0 %v810
    %825 = vmatpush.xpose.msra.mxu0 %v808
    %826 = vmatpush.xpose.msra.mxu0 %v806
    %827 = vmatpush.xpose.msra.mxu0 %v804
    %828 = vmatmul.f32.gmra.mxu0 %v796
    %v829 = vpop.f32.mrf.mxu0
    %v830 = vadd.f32 %v301, %v829
    %831 = vmatmul.f32.gmra.mxu0 %v798
    %v832 = vpop.f32.mrf.mxu0
    %v833 = vadd.f32 %v302, %v832
    %834 = vmatmul.f32.gmra.mxu0 %v800
    %v835 = vpop.f32.mrf.mxu0
    %v836 = vadd.f32 %v303, %v835
    %837 = vmatmul.f32.gmra.mxu0 %v802
    %v838 = vpop.f32.mrf.mxu0
    %v839 = vadd.f32 %v304, %v838
    %840 = vdwg.mxu0
    %v841 = vsel %vm65, %v830, -inf
    %842 = vmax.xlane.f32.xlu0 %v841
    %v843 = vpop.xlane.xlu0 %842
    %v844 = vsel %vm65, %v833, -inf
    %845 = vmax.xlane.f32.xlu0 %v844
    %v846 = vpop.xlane.xlu0 %845
    %v847 = vsel %vm65, %v836, -inf
    %848 = vmax.xlane.f32.xlu0 %v847
    %v849 = vpop.xlane.xlu0 %848
    %v850 = vsel %vm65, %v839, -inf
    %851 = vmax.xlane.f32.xlu0 %v850
    %v852 = vpop.xlane.xlu0 %851
    %v853 = vsub.f32 %v830, %v843
    %v854 = vsub.f32 %v833, %v846
    %v855 = vsub.f32 %v836, %v849
    %v856 = vsub.f32 %v839, %v852
    %v857 = vmul.f32 %v853, 1.442695
    %v858 = vpow.pop %v857
    %v859 = vmul.f32 %v854, 1.442695
    %v860 = vpow.pop %v859
    %v861 = vmul.f32 %v855, 1.442695
    %v862 = vpow.pop %v861
    %v863 = vmul.f32 %v856, 1.442695
    %v864 = vpow.pop %v863
    %v865 = vsel %vm65, %v858, 0.0
    %866 = vadd.xlane.f32.xlu0 %v865
    %v867 = vpop.xlane.xlu0 %866
    %v868 = vsel %vm65, %v860, 0.0
    %869 = vadd.xlane.f32.xlu0 %v868
    %v870 = vpop.xlane.xlu0 %869
    %v871 = vsel %vm65, %v862, 0.0
    %872 = vadd.xlane.f32.xlu0 %v871
    %v873 = vpop.xlane.xlu0 %872
    %v874 = vsel %vm65, %v864, 0.0
    %875 = vadd.xlane.f32.xlu0 %v874
    %v876 = vpop.xlane.xlu0 %875
    %v877 = vrcp.pop %v867
    %v878 = vrcp.pop %v870
    %v879 = vrcp.pop %v873
    %v880 = vrcp.pop %v876
    %v881 = vmul.f32 %v858, %v877
    %v882 = vmul.f32 %v860, %v878
    %v883 = vmul.f32 %v862, %v879
    %v884 = vmul.f32 %v864, %v880
    %885 = vrot.lane.b32.xlu0 %v215, 40
    %v886 = vpop.permute.xlu0 %885
    %887 = vrot.lane.b32.xlu0 %v218, 40
    %v888 = vpop.permute.xlu0 %887
    %889 = vrot.lane.b32.xlu0 %v221, 40
    %v890 = vpop.permute.xlu0 %889
    %891 = vrot.lane.b32.xlu0 %v224, 40
    %v892 = vpop.permute.xlu0 %891
    %v898 = vsel %vm65, %v881, 0
    %v901 = vsel %vm65, %v882, 0
    %v904 = vsel %vm65, %v883, 0
    %v907 = vsel %vm65, %v884, 0
    %909 = vmatpush.msra.mxu0 0.0
    %910 = vmatpush.msra.mxu0 0.0
    %911 = vmatpush.msra.mxu0 0.0
    %912 = vmatpush.msra.mxu0 0.0
    %913 = vmatpush.msra.mxu0 0.0
    %914 = vmatpush.msra.mxu0 0.0
    %915 = vmatpush.msra.mxu0 0.0
    %916 = vmatpush.msra.mxu0 0.0
    %917 = vmatpush.msra.mxu0 0.0
    %918 = vmatpush.msra.mxu0 0.0
    %919 = vmatpush.msra.mxu0 0.0
    %920 = vmatpush.msra.mxu0 0.0
    %921 = vmatpush.msra.mxu0 %v892
    %922 = vmatpush.msra.mxu0 %v890
    %923 = vmatpush.msra.mxu0 %v888
    %924 = vmatpush.msra.mxu0 %v886
    %925 = vmatmul.f32.gmra.mxu0 %v898
    %v926 = vpop.f32.mrf.mxu0
    %v927 = vadd.f32 0.0, %v926
    %928 = vmatmul.f32.gmra.mxu0 %v901
    %v929 = vpop.f32.mrf.mxu0
    %v930 = vadd.f32 0.0, %v929
    %931 = vmatmul.f32.gmra.mxu0 %v904
    %v932 = vpop.f32.mrf.mxu0
    %v933 = vadd.f32 0.0, %v932
    %934 = vmatmul.f32.gmra.mxu0 %v907
    %v935 = vpop.f32.mrf.mxu0
    %v936 = vadd.f32 0.0, %v935
    %937 = vdwg.mxu0
    %942 = vrot.lane.b32.xlu0 %v611, 8
    %v943 = vpop.permute.xlu0 %942
    %944 = vrot.lane.b32.xlu0 %v614, 8
    %v945 = vpop.permute.xlu0 %944
    %946 = vrot.lane.b32.xlu0 %v617, 8
    %v947 = vpop.permute.xlu0 %946
    %948 = vrot.lane.b32.xlu0 %v620, 8
    %v949 = vpop.permute.xlu0 %948
    %958 = vrot.lane.b32.xlu0 %v769, 16
    %v959 = vpop.permute.xlu0 %958
    %960 = vrot.lane.b32.xlu0 %v772, 16
    %v961 = vpop.permute.xlu0 %960
    %962 = vrot.lane.b32.xlu0 %v775, 16
    %v963 = vpop.permute.xlu0 %962
    %964 = vrot.lane.b32.xlu0 %v778, 16
    %v965 = vpop.permute.xlu0 %964
    %974 = vrot.lane.b32.xlu0 %v927, 24
    %v975 = vpop.permute.xlu0 %974
    %976 = vrot.lane.b32.xlu0 %v930, 24
    %v977 = vpop.permute.xlu0 %976
    %978 = vrot.lane.b32.xlu0 %v933, 24
    %v979 = vpop.permute.xlu0 %978
    %980 = vrot.lane.b32.xlu0 %v936, 24
    %v981 = vpop.permute.xlu0 %980
    %v986 = vsel %vm317, %v453, %v943
    %v987 = vsel %vm317, %v456, %v945
    %v988 = vsel %vm317, %v459, %v947
    %v989 = vsel %vm317, %v462, %v949
    %vm990 = vcmask 130048
    %v991 = vsel %vm990, %v986, %v959
    %v992 = vsel %vm990, %v987, %v961
    %v993 = vsel %vm990, %v988, %v963
    %v994 = vsel %vm990, %v989, %v965
    %vm995 = vcmask 195584
    %v996 = vsel %vm995, %v991, %v975
    %v997 = vsel %vm995, %v992, %v977
    %v998 = vsel %vm995, %v993, %v979
    %v999 = vsel %vm995, %v994, %v981
    %v1000 = vld [vmem:[%s5] sm:$0xff]
    %v1001 = vld [vmem:[%s5 + $0x8] sm:$0xff]
    %v1002 = vld [vmem:[%s5 + $0x10] sm:$0xff]
    %v1003 = vld [vmem:[%s5 + $0x18] sm:$0xff]
    %v1005 = vsel %vm65, %v996, 0
    %v1008 = vsel %vm65, %v997, 0
    %v1011 = vsel %vm65, %v998, 0
    %v1014 = vsel %vm65, %v999, 0
    %1016 = vmatpush.msra.mxu0 0.0
    %1017 = vmatpush.msra.mxu0 0.0
    %1018 = vmatpush.msra.mxu0 0.0
    %1019 = vmatpush.msra.mxu0 0.0
    %1020 = vmatpush.msra.mxu0 0.0
    %1021 = vmatpush.msra.mxu0 0.0
    %1022 = vmatpush.msra.mxu0 0.0
    %1023 = vmatpush.msra.mxu0 0.0
    %1024 = vmatpush.msra.mxu0 0.0
    %1025 = vmatpush.msra.mxu0 0.0
    %1026 = vmatpush.msra.mxu0 0.0
    %1027 = vmatpush.msra.mxu0 0.0
    %1028 = vmatpush.msra.mxu0 %v1003
    %1029 = vmatpush.msra.mxu0 %v1002
    %1030 = vmatpush.msra.mxu0 %v1001
    %1031 = vmatpush.msra.mxu0 %v1000
    %1032 = vmatmul.f32.gmra.mxu0 %v1005
    %v1033 = vpop.f32.mrf.mxu0
    %v1034 = vadd.f32 0.0, %v1033
    %1035 = vmatmul.f32.gmra.mxu0 %v1008
    %v1036 = vpop.f32.mrf.mxu0
    %v1037 = vadd.f32 0.0, %v1036
    %1038 = vmatmul.f32.gmra.mxu0 %v1011
    %v1039 = vpop.f32.mrf.mxu0
    %v1040 = vadd.f32 0.0, %v1039
    %1041 = vmatmul.f32.gmra.mxu0 %v1014
    %v1042 = vpop.f32.mrf.mxu0
    %v1043 = vadd.f32 0.0, %v1042
    %1044 = vdwg.mxu0
    %v1045 = vadd.f32 %v61, %v1034
    %v1046 = vadd.f32 %v62, %v1037
    %v1047 = vadd.f32 %v63, %v1040
    %v1048 = vadd.f32 %v64, %v1043
    %v1049 = vld [vmem:[%s6] sm:$0x1]
    %v1051 = vperm.slane %v1049, 0
    %v1053 = vadd.f32 %v1045, %v1051
    %v1054 = vadd.f32 %v1046, %v1051
    %v1055 = vadd.f32 %v1047, %v1051
    %v1056 = vadd.f32 %v1048, %v1051
    %v1057 = vsel %vm65, %v1053, 0.0
    %1058 = vadd.xlane.f32.xlu0 %v1057
    %v1059 = vpop.xlane.xlu0 %1058
    %v1060 = vsel %vm65, %v1054, 0.0
    %1061 = vadd.xlane.f32.xlu0 %v1060
    %v1062 = vpop.xlane.xlu0 %1061
    %v1063 = vsel %vm65, %v1055, 0.0
    %1064 = vadd.xlane.f32.xlu0 %v1063
    %v1065 = vpop.xlane.xlu0 %1064
    %v1066 = vsel %vm65, %v1056, 0.0
    %1067 = vadd.xlane.f32.xlu0 %v1066
    %v1068 = vpop.xlane.xlu0 %1067
    %v1069 = vmul.f32 %v1059, %v84
    %v1070 = vmul.f32 %v1062, %v84
    %v1071 = vmul.f32 %v1065, %v84
    %v1072 = vmul.f32 %v1068, %v84
    %v1073 = vsub.f32 %v1053, %v1069
    %v1074 = vsub.f32 %v1054, %v1070
    %v1075 = vsub.f32 %v1055, %v1071
    %v1076 = vsub.f32 %v1056, %v1072
    %v1077 = vmul.f32 %v1073, %v1073
    %v1078 = vmul.f32 %v1074, %v1074
    %v1079 = vmul.f32 %v1075, %v1075
    %v1080 = vmul.f32 %v1076, %v1076
    %v1081 = vsel %vm65, %v1077, 0.0
    %1082 = vadd.xlane.f32.xlu0 %v1081
    %v1083 = vpop.xlane.xlu0 %1082
    %v1084 = vsel %vm65, %v1078, 0.0
    %1085 = vadd.xlane.f32.xlu0 %v1084
    %v1086 = vpop.xlane.xlu0 %1085
    %v1087 = vsel %vm65, %v1079, 0.0
    %1088 = vadd.xlane.f32.xlu0 %v1087
    %v1089 = vpop.xlane.xlu0 %1088
    %v1090 = vsel %vm65, %v1080, 0.0
    %1091 = vadd.xlane.f32.xlu0 %v1090
    %v1092 = vpop.xlane.xlu0 %1091
    %v1093 = vmul.f32 %v1083, %v84
    %v1094 = vmul.f32 %v1086, %v84
    %v1095 = vmul.f32 %v1089, %v84
    %v1096 = vmul.f32 %v1092, %v84
    %v1097 = vadd.f32 %v1093, 1e-05
    %v1098 = vadd.f32 %v1094, 1e-05
    %v1099 = vadd.f32 %v1095, 1e-05
    %v1100 = vadd.f32 %v1096, 1e-05
    %v1101 = vrsqrt.pop %v1097
    %v1102 = vmul.f32 %v1101, %v1097
    %v1103 = vmul.f32 %v1102, %v1101
    %v1104 = vmul.f32 0.5, %v1103
    %v1105 = vsub.f32 1.5, %v1104
    %v1106 = vmul.f32 %v1101, %v1105
    %vm1107 = vweird.f32 %v1097
    %vm1108 = vweird.f32 %v1101
    %vm1109 = vmor %vm1107, %vm1108
    %v1110 = vsel %vm1109, %v1101, %v1106
    %v1111 = vrsqrt.pop %v1098
    %v1112 = vmul.f32 %v1111, %v1098
    %v1113 = vmul.f32 %v1112, %v1111
    %v1114 = vmul.f32 0.5, %v1113
    %v1115 = vsub.f32 1.5, %v1114
    %v1116 = vmul.f32 %v1111, %v1115
    %vm1117 = vweird.f32 %v1098
    %vm1118 = vweird.f32 %v1111
    %vm1119 = vmor %vm1117, %vm1118
    %v1120 = vsel %vm1119, %v1111, %v1116
    %v1121 = vrsqrt.pop %v1099
    %v1122 = vmul.f32 %v1121, %v1099
    %v1123 = vmul.f32 %v1122, %v1121
    %v1124 = vmul.f32 0.5, %v1123
    %v1125 = vsub.f32 1.5, %v1124
    %v1126 = vmul.f32 %v1121, %v1125
    %vm1127 = vweird.f32 %v1099
    %vm1128 = vweird.f32 %v1121
    %vm1129 = vmor %vm1127, %vm1128
    %v1130 = vsel %vm1129, %v1121, %v1126
    %v1131 = vrsqrt.pop %v1100
    %v1132 = vmul.f32 %v1131, %v1100
    %v1133 = vmul.f32 %v1132, %v1131
    %v1134 = vmul.f32 0.5, %v1133
    %v1135 = vsub.f32 1.5, %v1134
    %v1136 = vmul.f32 %v1131, %v1135
    %vm1137 = vweird.f32 %v1100
    %vm1138 = vweird.f32 %v1131
    %vm1139 = vmor %vm1137, %vm1138
    %v1140 = vsel %vm1139, %v1131, %v1136
    %v1141 = vmul.f32 %v1073, %v1110
    %v1142 = vmul.f32 %v1074, %v1120
    %v1143 = vmul.f32 %v1075, %v1130
    %v1144 = vmul.f32 %v1076, %v1140
    %v1145 = vld [vmem:[%s7] sm:$0x1]
    %v1147 = vperm.slane %v1145, 0
    %v1149 = vmul.f32 %v1141, %v1147
    %v1150 = vmul.f32 %v1142, %v1147
    %v1151 = vmul.f32 %v1143, %v1147
    %v1152 = vmul.f32 %v1144, %v1147
    %v1153 = vld [vmem:[%s8] sm:$0x1]
    %v1155 = vperm.slane %v1153, 0
    %v1157 = vadd.f32 %v1149, %v1155
    %v1158 = vadd.f32 %v1150, %v1155
    %v1159 = vadd.f32 %v1151, %v1155
    %v1160 = vadd.f32 %v1152, %v1155
    %v1161 = vld [vmem:[#allocation2] sm:$0xff]
    %v1162 = vld [vmem:[#allocation2 + $0x8] sm:$0xff]
    %v1163 = vld [vmem:[#allocation2 + $0x10] sm:$0xff]
    %v1164 = vld [vmem:[#allocation2 + $0x18] sm:$0xff]
    %v1165 = vld [vmem:[%s10] sm:$0x1]
    %v1167 = vperm.slane %v1165, 0
    %v1170 = vsel %vm65, %v1157, 0
    %v1173 = vsel %vm65, %v1158, 0
    %v1176 = vsel %vm65, %v1159, 0
    %v1179 = vsel %vm65, %v1160, 0
    %1181 = vmatpush.msra.mxu0 0.0
    %1182 = vmatpush.msra.mxu0 0.0
    %1183 = vmatpush.msra.mxu0 0.0
    %1184 = vmatpush.msra.mxu0 0.0
    %1185 = vmatpush.msra.mxu0 0.0
    %1186 = vmatpush.msra.mxu0 0.0
    %1187 = vmatpush.msra.mxu0 0.0
    %1188 = vmatpush.msra.mxu0 0.0
    %1189 = vmatpush.msra.mxu0 0.0
    %1190 = vmatpush.msra.mxu0 0.0
    %1191 = vmatpush.msra.mxu0 0.0
    %1192 = vmatpush.msra.mxu0 0.0
    %1193 = vmatpush.msra.mxu0 %v1164
    %1194 = vmatpush.msra.mxu0 %v1163
    %1195 = vmatpush.msra.mxu0 %v1162
    %1196 = vmatpush.msra.mxu0 %v1161
    %1197 = vmatmul.f32.gmra.mxu0 %v1170
    %v1198 = vpop.f32.mrf.mxu0
    %v1199 = vadd.f32 %v1167, %v1198
    %1200 = vmatmul.f32.gmra.mxu0 %v1173
    %v1201 = vpop.f32.mrf.mxu0
    %v1202 = vadd.f32 %v1167, %v1201
    %1203 = vmatmul.f32.gmra.mxu0 %v1176
    %v1204 = vpop.f32.mrf.mxu0
    %v1205 = vadd.f32 %v1167, %v1204
    %1206 = vmatmul.f32.gmra.mxu0 %v1179
    %v1207 = vpop.f32.mrf.mxu0
    %v1208 = vadd.f32 %v1167, %v1207
    %1209 = vdwg.mxu0
    %v1210 = vmul.f32 %v1199, 0.5
    %v1211 = vmul.f32 %v1202, 0.5
    %v1212 = vmul.f32 %v1205, 0.5
    %v1213 = vmul.f32 %v1208, 0.5
    %v1214 = vmul.f32 %v1199, 0.70710677
    %v1215 = vmul.f32 %v1202, 0.70710677
    %v1216 = vmul.f32 %v1205, 0.70710677
    %v1217 = vmul.f32 %v1208, 0.70710677
    %v1218 = vmul.f32 %v1214, %v1214
    %v1219 = vmin.f32 16.0, %v1218
    %v1220 = vmul.f32 %v1219, 2.1237322e-06
    %v1221 = vadd.f32 %v1220, 0.00028619796
    %v1222 = vmul.f32 %v1219, %v1221
    %v1223 = vadd.f32 %v1222, 0.0036580483
    %v1224 = vmul.f32 %v1219, %v1223
    %v1225 = vadd.f32 %v1224, 0.05243302
    %v1226 = vmul.f32 %v1219, %v1225
    %v1227 = vadd.f32 %v1226, 0.18741608
    %v1228 = vmul.f32 %v1219, %v1227
    %v1229 = vadd.f32 %v1228, 1.1283791
    %v1230 = vmul.f32 %v1214, %v1229
    %v1231 = vmul.f32 %v1219, 3.8918573e-05
    %v1232 = vadd.f32 %v1231, 0.001143296
    %v1233 = vmul.f32 %v1219, %v1232
    %v1234 = vadd.f32 %v1233, 0.014752088
    %v1235 = vmul.f32 %v1219, %v1234
    %v1236 = vadd.f32 %v1235, 0.112945676
    %v1237 = vmul.f32 %v1219, %v1236
    %v1238 = vadd.f32 %v1237, 0.4994258
    %v1239 = vmul.f32 %v1219, %v1238
    %v1240 = vadd.f32 %v1239, 1.0
    %v1241 = vrcp.pop %v1240
    %v1242 = vmul.f32 %v1240, %v1241
    %v1243 = vsub.f32 1.0, %v1242
    %v1244 = vmul.f32 %v1241, %v1243
    %v1245 = vadd.f32 %v1241, %v1244
    %vm1246 = vweird.f32 %v1240
    %vm1247 = vweird.f32 %v1241
    %vm1248 = vmor %vm1246, %vm1247
    %v1249 = vsel %vm1248, %v1241, %v1245
    %v1250 = vand.u32 2147483647, %v1240
    %vm1251 = vcmp.eq.f32.partialorder %v1250, 8.507059e+37
    %v1252 = vand.u32 %v1240, 2147483648
    %v1253 = vor.u32 1.1754944e-38, %v1252
    %v1254 = vsel %vm1251, %v1253, %v1249
    %v1255 = vmul.f32 %v1230, %v1254
    %v1256 = vmin.f32 %v1255, 1.0
    %v1257 = vmax.f32 %v1256, -1.0
    %v1258 = vmul.f32 %v1215, %v1215
    %v1259 = vmin.f32 16.0, %v1258
    %v1260 = vmul.f32 %v1259, 2.1237322e-06
    %v1261 = vadd.f32 %v1260, 0.00028619796
    %v1262 = vmul.f32 %v1259, %v1261
    %v1263 = vadd.f32 %v1262, 0.0036580483
    %v1264 = vmul.f32 %v1259, %v1263
    %v1265 = vadd.f32 %v1264, 0.05243302
    %v1266 = vmul.f32 %v1259, %v1265
    %v1267 = vadd.f32 %v1266, 0.18741608
    %v1268 = vmul.f32 %v1259, %v1267
    %v1269 = vadd.f32 %v1268, 1.1283791
    %v1270 = vmul.f32 %v1215, %v1269
    %v1271 = vmul.f32 %v1259, 3.8918573e-05
    %v1272 = vadd.f32 %v1271, 0.001143296
    %v1273 = vmul.f32 %v1259, %v1272
    %v1274 = vadd.f32 %v1273, 0.014752088
    %v1275 = vmul.f32 %v1259, %v1274
    %v1276 = vadd.f32 %v1275, 0.112945676
    %v1277 = vmul.f32 %v1259, %v1276
    %v1278 = vadd.f32 %v1277, 0.4994258
    %v1279 = vmul.f32 %v1259, %v1278
    %v1280 = vadd.f32 %v1279, 1.0
    %v1281 = vrcp.pop %v1280
    %v1282 = vmul.f32 %v1280, %v1281
    %v1283 = vsub.f32 1.0, %v1282
    %v1284 = vmul.f32 %v1281, %v1283
    %v1285 = vadd.f32 %v1281, %v1284
    %vm1286 = vweird.f32 %v1280
    %vm1287 = vweird.f32 %v1281
    %vm1288 = vmor %vm1286, %vm1287
    %v1289 = vsel %vm1288, %v1281, %v1285
    %v1290 = vand.u32 2147483647, %v1280
    %vm1291 = vcmp.eq.f32.partialorder %v1290, 8.507059e+37
    %v1292 = vand.u32 %v1280, 2147483648
    %v1293 = vor.u32 1.1754944e-38, %v1292
    %v1294 = vsel %vm1291, %v1293, %v1289
    %v1295 = vmul.f32 %v1270, %v1294
    %v1296 = vmin.f32 %v1295, 1.0
    %v1297 = vmax.f32 %v1296, -1.0
    %v1298 = vmul.f32 %v1216, %v1216
    %v1299 = vmin.f32 16.0, %v1298
    %v1300 = vmul.f32 %v1299, 2.1237322e-06
    %v1301 = vadd.f32 %v1300, 0.00028619796
    %v1302 = vmul.f32 %v1299, %v1301
    %v1303 = vadd.f32 %v1302, 0.0036580483
    %v1304 = vmul.f32 %v1299, %v1303
    %v1305 = vadd.f32 %v1304, 0.05243302
    %v1306 = vmul.f32 %v1299, %v1305
    %v1307 = vadd.f32 %v1306, 0.18741608
    %v1308 = vmul.f32 %v1299, %v1307
    %v1309 = vadd.f32 %v1308, 1.1283791
    %v1310 = vmul.f32 %v1216, %v1309
    %v1311 = vmul.f32 %v1299, 3.8918573e-05
    %v1312 = vadd.f32 %v1311, 0.001143296
    %v1313 = vmul.f32 %v1299, %v1312
    %v1314 = vadd.f32 %v1313, 0.014752088
    %v1315 = vmul.f32 %v1299, %v1314
    %v1316 = vadd.f32 %v1315, 0.112945676
    %v1317 = vmul.f32 %v1299, %v1316
    %v1318 = vadd.f32 %v1317, 0.4994258
    %v1319 = vmul.f32 %v1299, %v1318
    %v1320 = vadd.f32 %v1319, 1.0
    %v1321 = vrcp.pop %v1320
    %v1322 = vmul.f32 %v1320, %v1321
    %v1323 = vsub.f32 1.0, %v1322
    %v1324 = vmul.f32 %v1321, %v1323
    %v1325 = vadd.f32 %v1321, %v1324
    %vm1326 = vweird.f32 %v1320
    %vm1327 = vweird.f32 %v1321
    %vm1328 = vmor %vm1326, %vm1327
    %v1329 = vsel %vm1328, %v1321, %v1325
    %v1330 = vand.u32 2147483647, %v1320
    %vm1331 = vcmp.eq.f32.partialorder %v1330, 8.507059e+37
    %v1332 = vand.u32 %v1320, 2147483648
    %v1333 = vor.u32 1.1754944e-38, %v1332
    %v1334 = vsel %vm1331, %v1333, %v1329
    %v1335 = vmul.f32 %v1310, %v1334
    %v1336 = vmin.f32 %v1335, 1.0
    %v1337 = vmax.f32 %v1336, -1.0
    %v1338 = vmul.f32 %v1217, %v1217
    %v1339 = vmin.f32 16.0, %v1338
    %v1340 = vmul.f32 %v1339, 2.1237322e-06
    %v1341 = vadd.f32 %v1340, 0.00028619796
    %v1342 = vmul.f32 %v1339, %v1341
    %v1343 = vadd.f32 %v1342, 0.0036580483
    %v1344 = vmul.f32 %v1339, %v1343
    %v1345 = vadd.f32 %v1344, 0.05243302
    %v1346 = vmul.f32 %v1339, %v1345
    %v1347 = vadd.f32 %v1346, 0.18741608
    %v1348 = vmul.f32 %v1339, %v1347
    %v1349 = vadd.f32 %v1348, 1.1283791
    %v1350 = vmul.f32 %v1217, %v1349
    %v1351 = vmul.f32 %v1339, 3.8918573e-05
    %v1352 = vadd.f32 %v1351, 0.001143296
    %v1353 = vmul.f32 %v1339, %v1352
    %v1354 = vadd.f32 %v1353, 0.014752088
    %v1355 = vmul.f32 %v1339, %v1354
    %v1356 = vadd.f32 %v1355, 0.112945676
    %v1357 = vmul.f32 %v1339, %v1356
    %v1358 = vadd.f32 %v1357, 0.4994258
    %v1359 = vmul.f32 %v1339, %v1358
    %v1360 = vadd.f32 %v1359, 1.0
    %v1361 = vrcp.pop %v1360
    %v1362 = vmul.f32 %v1360, %v1361
    %v1363 = vsub.f32 1.0, %v1362
    %v1364 = vmul.f32 %v1361, %v1363
    %v1365 = vadd.f32 %v1361, %v1364
    %vm1366 = vweird.f32 %v1360
    %vm1367 = vweird.f32 %v1361
    %vm1368 = vmor %vm1366, %vm1367
    %v1369 = vsel %vm1368, %v1361, %v1365
    %v1370 = vand.u32 2147483647, %v1360
    %vm1371 = vcmp.eq.f32.partialorder %v1370, 8.507059e+37
    %v1372 = vand.u32 %v1360, 2147483648
    %v1373 = vor.u32 1.1754944e-38, %v1372
    %v1374 = vsel %vm1371, %v1373, %v1369
    %v1375 = vmul.f32 %v1350, %v1374
    %v1376 = vmin.f32 %v1375, 1.0
    %v1377 = vmax.f32 %v1376, -1.0
    %v1378 = vadd.f32 %v1257, 1.0
    %v1379 = vadd.f32 %v1297, 1.0
    %v1380 = vadd.f32 %v1337, 1.0
    %v1381 = vadd.f32 %v1377, 1.0
    %v1382 = vmul.f32 %v1210, %v1378
    %v1383 = vmul.f32 %v1211, %v1379
    %v1384 = vmul.f32 %v1212, %v1380
    %v1385 = vmul.f32 %v1213, %v1381
    %v1386 = vld [vmem:[%s11] sm:$0xff]
    %v1387 = vld [vmem:[%s11 + $0x8] sm:$0xff]
    %v1388 = vld [vmem:[%s11 + $0x10] sm:$0xff]
    %v1389 = vld [vmem:[%s11 + $0x18] sm:$0xff]
    %v1390 = vld [vmem:[%s11 + $0x20] sm:$0xff]
    %v1391 = vld [vmem:[%s11 + $0x28] sm:$0xff]
    %v1392 = vld [vmem:[%s11 + $0x30] sm:$0xff]
    %v1393 = vld [vmem:[%s11 + $0x38] sm:$0xff]
    %v1394 = vld [vmem:[%s12] sm:$0x1]
    %v1396 = vperm.slane %v1394, 0
    %vm1398 = vcmask 523264
    %v1400 = vsel %vm1398, %v1382, 0
    %v1403 = vsel %vm1398, %v1383, 0
    %v1406 = vsel %vm1398, %v1384, 0
    %v1409 = vsel %vm1398, %v1385, 0
    %1411 = vmatpush.msra.mxu0 0.0
    %1412 = vmatpush.msra.mxu0 0.0
    %1413 = vmatpush.msra.mxu0 0.0
    %1414 = vmatpush.msra.mxu0 0.0
    %1415 = vmatpush.msra.mxu0 0.0
    %1416 = vmatpush.msra.mxu0 0.0
    %1417 = vmatpush.msra.mxu0 0.0
    %1418 = vmatpush.msra.mxu0 0.0
    %1419 = vmatpush.msra.mxu0 %v1393
    %1420 = vmatpush.msra.mxu0 %v1392
    %1421 = vmatpush.msra.mxu0 %v1391
    %1422 = vmatpush.msra.mxu0 %v1390
    %1423 = vmatpush.msra.mxu0 %v1389
    %1424 = vmatpush.msra.mxu0 %v1388
    %1425 = vmatpush.msra.mxu0 %v1387
    %1426 = vmatpush.msra.mxu0 %v1386
    %1427 = vmatmul.f32.gmra.mxu0 %v1400
    %v1428 = vpop.f32.mrf.mxu0
    %v1429 = vadd.f32 %v1396, %v1428
    %1430 = vmatmul.f32.gmra.mxu0 %v1403
    %v1431 = vpop.f32.mrf.mxu0
    %v1432 = vadd.f32 %v1396, %v1431
    %1433 = vmatmul.f32.gmra.mxu0 %v1406
    %v1434 = vpop.f32.mrf.mxu0
    %v1435 = vadd.f32 %v1396, %v1434
    %1436 = vmatmul.f32.gmra.mxu0 %v1409
    %v1437 = vpop.f32.mrf.mxu0
    %v1438 = vadd.f32 %v1396, %v1437
    %1439 = vdwg.mxu0
    %v1440 = vadd.f32 %v1053, %v1429
    %v1441 = vadd.f32 %v1054, %v1432
    %v1442 = vadd.f32 %v1055, %v1435
    %v1443 = vadd.f32 %v1056, %v1438
    %1444 = vst.msk [vmem:[#allocation5] sm:$0xff] %vm65, %v1440
    %1445 = vst.msk [vmem:[#allocation5 + $0x8] sm:$0xff] %vm65, %v1441
    %1446 = vst.msk [vmem:[#allocation5 + $0x10] sm:$0xff] %vm65, %v1442
    %1447 = vst.msk [vmem:[#allocation5 + $0x18] sm:$0xff] %vm65, %v1443
    // Predicated region
    $region58: #{attention_block.1} parent=1 // pred_check
      _
    $region59: #{attention_block.1} parent=1 // pred_check_branch
      %1449 = sbr.rel (0) target = $region61
    $region60: #{attention_block.1} parent=1 // pred_region
      %1451 = vsyncadd [#allocation4], 0
      %s1452 = sshll.u32 [#allocation5], 4
      %s1453 = int_to_ptr.vmem [resolvable:$true] %s1452
      %s1454 = sshll.u32 %s13, 4
      %s1455 = int_to_ptr.hbm [resolvable:$true] %s1454
      %1460 = dma.vmem_to_hbm [thread:$0]  %s1453, 512, %s1455, [#allocation4], 128, 128, 8
    $region61: #{attention_block.1} parent=1 // pred_fallthru
      _
    // Predicated region
    $region62: #{attention_block.1} parent=1 // pred_check
      _
    $region63: #{attention_block.1} parent=1 // pred_check_branch
      %1462 = sbr.rel (0) target = $region65
    $region64: #{attention_block.1} parent=1 // pred_region
      %1464 = dma.done [#allocation4], 512
    $region65: #{attention_block.1} parent=1 // pred_fallthru
      _
    %1465 = vsyncpa [#allocation3], 1
    %1466 = vsyncpa [#allocation4], 1

</llo_original>
